<compile_context>
chip_gen: v7x
topology: tpu7x:2x2x1
jax: 0.10.0
libtpu: 0.0.40
codegen_flags: <defaults>
</compile_context>

<pallas_src>
import math

import jax
import jax.numpy as jnp
from jax.experimental import pallas as pl
from jax.experimental.pallas import tpu as pltpu


def _make_mab_kernel(num_heads, dim_v, tb, nq, nk, dim_q, dim_k):
    dh = dim_v // num_heads
    scale = 1.0 / math.sqrt(dim_v)

    def mab_kernel(q_ref, k_ref,
                   wq_ref, bq_ref, wk_ref, bk_ref, wv_ref, bv_ref,
                   wo_ref, bo_ref, o_ref):
        # Fused batch folded into the matmul M dimension (bf16 MXU inputs).
        xq = q_ref[...].reshape(tb * nq, dim_q)          # bf16 (TB*Nq, Dq)
        xk = k_ref[...].reshape(tb * nk, dim_k)          # bf16 (TB*Nk, Dk)

        o_heads = []
        gate_logits = bo_ref[...]                        # (1, dim_v) f32, broadcasts
        # num_heads is tiny & static -> unrolled; per-head weights were split in
        # the wrapper so there is no in-kernel transpose or lane slicing.
        for h in range(num_heads):
            qh = (jnp.dot(xq, wq_ref[h], preferred_element_type=jnp.float32)
                  + bq_ref[h]).reshape(tb, nq, dh)       # f32
            kh = (jnp.dot(xk, wk_ref[h], preferred_element_type=jnp.float32)
                  + bk_ref[h]).reshape(tb, nk, dh)
            vh = (jnp.dot(xk, wv_ref[h], preferred_element_type=jnp.float32)
                  + bv_ref[h]).reshape(tb, nk, dh)

            # Attention, batched over the fused TB batch (single batch dim).
            s = jnp.einsum('bqd,bkd->bqk',
                           qh.astype(jnp.bfloat16), kh.astype(jnp.bfloat16),
                           preferred_element_type=jnp.float32) * scale
            s = s - jnp.max(s, axis=-1, keepdims=True)
            p = jnp.exp(s)
            p = p * pl.reciprocal(jnp.sum(p, axis=-1, keepdims=True),
                                  approx=True)
            oh = qh + jnp.einsum('bqk,bkd->bqd',
                                 p.astype(jnp.bfloat16),
                                 vh.astype(jnp.bfloat16),
                                 preferred_element_type=jnp.float32)
            o_heads.append(oh)
            # fc_o(O) accumulated per head: O @ Wo^T == sum_h O_h @ Wo^T[hdh:(h+1)dh, :]
            gate_logits = gate_logits + jnp.dot(
                oh.reshape(tb * nq, dh).astype(jnp.bfloat16), wo_ref[h],
                preferred_element_type=jnp.float32)

        o = jnp.concatenate(o_heads, axis=-1)            # (TB, Nq, dim_v) f32
        gate = jax.nn.sigmoid(gate_logits).reshape(tb, nq, dim_v)
        o_ref[...] = (o + gate).astype(o_ref.dtype)

    return mab_kernel


def _pick_block_b(batch):
    """Fuse several batch elements per step but keep >= 2 parallel grid steps."""
    tb = min(batch, 8)
    while batch % tb:
        tb -= 1
    if batch // tb < 2 and tb > 1:
        tb = max(1, tb // 2)
        while batch % tb:
            tb -= 1
    return tb


def mab_forward(q_in, k_in, params, num_heads, *, block_b=None):
    """q_in: (B, Nq, dim_Q), k_in: (B, Nk, dim_K) float32 -> (B, Nq, dim_V)."""
    B, nq, dim_q = q_in.shape
    bk_, nk, dim_k = k_in.shape
    assert B == bk_
    wq, bq, wk, bk, wv, bv, wo, bo = params
    dim_v = wq.shape[0]
    assert dim_v % num_heads == 0
    dh = dim_v // num_heads

    tb = _pick_block_b(B) if block_b is None else block_b
    assert B % tb == 0
    grid_b = B // tb

    # Wrapper-side weight prep (layout plumbing, outside the kernel):
    # nn.Linear y = x @ W.T + b  ->  per-head W.T column blocks of width dh.
    def split_heads_in(w):  # (dim_v, d_in) -> (H, d_in, dh)
        return jnp.transpose(w.T.reshape(w.shape[1], num_heads, dh), (1, 0, 2))

    wq_h = split_heads_in(wq).astype(jnp.bfloat16)
    wk_h = split_heads_in(wk).astype(jnp.bfloat16)
    wv_h = split_heads_in(wv).astype(jnp.bfloat16)
    wo_h = wo.T.reshape(num_heads, dh, dim_v).astype(jnp.bfloat16)

    bq_h = bq.reshape(num_heads, 1, dh).astype(jnp.float32)
    bk_h = bk.reshape(num_heads, 1, dh).astype(jnp.float32)
    bv_h = bv.reshape(num_heads, 1, dh).astype(jnp.float32)
    bo_2 = bo.reshape(1, dim_v).astype(jnp.float32)

    q_bf = q_in.astype(jnp.bfloat16)
    k_bf = k_in.astype(jnp.bfloat16)

    kernel = _make_mab_kernel(num_heads, dim_v, tb, nq, nk, dim_q, dim_k)

    const3 = lambda b: (0, 0, 0)
    const2 = lambda b: (0, 0)

    return pl.pallas_call(
        kernel,
        out_shape=jax.ShapeDtypeStruct((B, nq, dim_v), jnp.float32),
        grid_spec=pltpu.PrefetchScalarGridSpec(
            num_scalar_prefetch=0,
            grid=(grid_b,),
            in_specs=[
                pl.BlockSpec((tb, nq, dim_q), lambda b: (b, 0, 0)),     # Q
                pl.BlockSpec((tb, nk, dim_k), lambda b: (b, 0, 0)),     # K
                pl.BlockSpec((num_heads, dim_q, dh), const3),           # fc_q W
                pl.BlockSpec((num_heads, 1, dh), const3),               # fc_q b
                pl.BlockSpec((num_heads, dim_k, dh), const3),           # fc_k W
                pl.BlockSpec((num_heads, 1, dh), const3),               # fc_k b
                pl.BlockSpec((num_heads, dim_k, dh), const3),           # fc_v W
                pl.BlockSpec((num_heads, 1, dh), const3),               # fc_v b
                pl.BlockSpec((num_heads, dh, dim_v), const3),           # fc_o W
                pl.BlockSpec((1, dim_v), const2),                       # fc_o b
            ],
            out_specs=pl.BlockSpec((tb, nq, dim_v), lambda b: (b, 0, 0)),
        ),
        compiler_params=pltpu.CompilerParams(
            dimension_semantics=("parallel",)),
    )(q_bf, k_bf, wq_h, bq_h, wk_h, bk_h, wv_h, bv_h, wo_h, bo_2)


def init_params(key, dim_q, dim_k, dim_v):
    """Deterministic nn.Linear-style init (uniform +/- 1/sqrt(fan_in))."""
    keys = jax.random.split(key, 8)

    def lin(kw, kb, fan_in, fan_out):
        bound = 1.0 / math.sqrt(fan_in)
        w = jax.random.uniform(kw, (fan_out, fan_in), jnp.float32, -bound, bound)
        b = jax.random.uniform(kb, (fan_out,), jnp.float32, -bound, bound)
        return w, b

    wq, bq = lin(keys[0], keys[1], dim_q, dim_v)
    wk, bk = lin(keys[2], keys[3], dim_k, dim_v)
    wv, bv = lin(keys[4], keys[5], dim_k, dim_v)
    wo, bo = lin(keys[6], keys[7], dim_v, dim_v)
    return (wq, bq, wk, bk, wv, bv, wo, bo)


def mab_reference(q_in, k_in, params, num_heads):
    """Pure-JAX f32 reference mirroring the PyTorch MAB forward (ln=False)."""
    wq, bq, wk, bk, wv, bv, wo, bo = params
    dim_v = wq.shape[0]
    Q = q_in @ wq.T + bq
    K = k_in @ wk.T + bk
    V = k_in @ wv.T + bv
    Q_ = jnp.concatenate(jnp.split(Q, num_heads, axis=2), axis=0)
    K_ = jnp.concatenate(jnp.split(K, num_heads, axis=2), axis=0)
    V_ = jnp.concatenate(jnp.split(V, num_heads, axis=2), axis=0)
    A = jax.nn.softmax(
        jnp.einsum('bnd,bmd->bnm', Q_, K_) / math.sqrt(dim_v), axis=2)
    O = Q_ + jnp.einsum('bnm,bmd->bnd', A, V_)
    O = jnp.concatenate(jnp.split(O, num_heads, axis=0), axis=2)
    return O + jax.nn.sigmoid(O @ wo.T + bo)


if __name__ == "__main__":
    B, Nq, Nk = 4, 8, 16
    dim_Q, dim_K, dim_V, num_heads = 32, 16, 32, 4

    key = jax.random.PRNGKey(0)
    kq, kk, kp = jax.random.split(key, 3)
    q_in = jax.random.normal(kq, (B, Nq, dim_Q), jnp.float32)
    k_in = jax.random.normal(kk, (B, Nk, dim_K), jnp.float32)
    params = init_params(kp, dim_Q, dim_K, dim_V)

    out = mab_forward(q_in, k_in, params, num_heads)
    out = jax.block_until_ready(out)

    ref = mab_reference(q_in, k_in, params, num_heads)
    assert out.shape == (B, Nq, dim_V)
    # bf16 matmul inputs + approx reciprocal -> relaxed tolerance vs f32 ref.
    err = float(jnp.max(jnp.abs(out - ref)))
    assert jnp.allclose(out, ref, atol=5e-2, rtol=5e-2), err
    print("KERNEL_OK")
</pallas_src>

<mosaic_0001>
module attributes {stable_mosaic.version = 11 : i64} {
  func.func @mab_kernel(%arg0: i32, %arg1: memref<2x8x32xbf16, #tpu.memory_space<vmem>>, %arg2: memref<2x16x16xbf16, #tpu.memory_space<vmem>>, %arg3: memref<4x32x8xbf16, #tpu.memory_space<vmem>>, %arg4: memref<4x1x8xf32, #tpu.memory_space<vmem>>, %arg5: memref<4x16x8xbf16, #tpu.memory_space<vmem>>, %arg6: memref<4x1x8xf32, #tpu.memory_space<vmem>>, %arg7: memref<4x16x8xbf16, #tpu.memory_space<vmem>>, %arg8: memref<4x1x8xf32, #tpu.memory_space<vmem>>, %arg9: memref<4x8x32xbf16, #tpu.memory_space<vmem>>, %arg10: memref<1x32xf32, #tpu.memory_space<vmem>>, %arg11: memref<2x8x32xf32, #tpu.memory_space<vmem>>) attributes {dimension_semantics = [#tpu.dimension_semantics<parallel>], iteration_bounds = array<i64: 2>, scalar_prefetch = 0 : i64, scratch_operands = 0 : i64, tpu.core_type = #tpu.core_type<tc>, window_params = [{transform_indices = @transform_0, window_bounds = array<i64: 2, 8, 32>}, {transform_indices = @transform_1, window_bounds = array<i64: 2, 16, 16>}, {pipeline_mode = #tpu.pipeline_mode<synchronous>, transform_indices = @transform_2, window_bounds = array<i64: 4, 32, 8>}, {pipeline_mode = #tpu.pipeline_mode<synchronous>, transform_indices = @transform_3, window_bounds = array<i64: 4, 1, 8>}, {pipeline_mode = #tpu.pipeline_mode<synchronous>, transform_indices = @transform_4, window_bounds = array<i64: 4, 16, 8>}, {pipeline_mode = #tpu.pipeline_mode<synchronous>, transform_indices = @transform_5, window_bounds = array<i64: 4, 1, 8>}, {pipeline_mode = #tpu.pipeline_mode<synchronous>, transform_indices = @transform_6, window_bounds = array<i64: 4, 16, 8>}, {pipeline_mode = #tpu.pipeline_mode<synchronous>, transform_indices = @transform_7, window_bounds = array<i64: 4, 1, 8>}, {pipeline_mode = #tpu.pipeline_mode<synchronous>, transform_indices = @transform_8, window_bounds = array<i64: 4, 8, 32>}, {pipeline_mode = #tpu.pipeline_mode<synchronous>, transform_indices = @transform_9, window_bounds = array<i64: 1, 32>}, {transform_indices = @transform_10, window_bounds = array<i64: 2, 8, 32>}]} {
    %c0 = arith.constant 0 : index
    %c0_0 = arith.constant 0 : index
    %c0_1 = arith.constant 0 : index
    %0 = vector.load %arg1[%c0, %c0_0, %c0_1] : memref<2x8x32xbf16, #tpu.memory_space<vmem>>, vector<2x8x32xbf16>
    %1 = vector.shape_cast %0 : vector<2x8x32xbf16> to vector<16x32xbf16>
    %c0_2 = arith.constant 0 : index
    %c0_3 = arith.constant 0 : index
    %c0_4 = arith.constant 0 : index
    %2 = vector.load %arg2[%c0_2, %c0_3, %c0_4] : memref<2x16x16xbf16, #tpu.memory_space<vmem>>, vector<2x16x16xbf16>
    %3 = vector.shape_cast %2 : vector<2x16x16xbf16> to vector<32x16xbf16>
    %c0_5 = arith.constant 0 : index
    %c0_6 = arith.constant 0 : index
    %4 = vector.load %arg10[%c0_5, %c0_6] : memref<1x32xf32, #tpu.memory_space<vmem>>, vector<1x32xf32>
    %c0_7 = arith.constant 0 : index
    %c0_8 = arith.constant 0 : index
    %c0_9 = arith.constant 0 : index
    %5 = vector.load %arg3[%c0_7, %c0_8, %c0_9] : memref<4x32x8xbf16, #tpu.memory_space<vmem>>, vector<1x32x8xbf16>
    %6 = vector.shape_cast %5 : vector<1x32x8xbf16> to vector<32x8xbf16>
    %cst = arith.constant dense<0.000000e+00> : vector<16x8xf32>
    %7 = tpu.matmul %1, %6, %cst {dimension_numbers = #tpu.dot_dimension_numbers<[1], [0], [0], [1], [0, 0, 1, 1], [], []>} : vector<16x32xbf16>, vector<32x8xbf16>, vector<16x8xf32> -> vector<16x8xf32>
    %c0_10 = arith.constant 0 : index
    %c0_11 = arith.constant 0 : index
    %c0_12 = arith.constant 0 : index
    %8 = vector.load %arg4[%c0_10, %c0_11, %c0_12] : memref<4x1x8xf32, #tpu.memory_space<vmem>>, vector<1x1x8xf32>
    %9 = vector.shape_cast %8 : vector<1x1x8xf32> to vector<1x8xf32>
    %10 = vector.broadcast %9 : vector<1x8xf32> to vector<16x8xf32>
    %11 = arith.addf %7, %10 : vector<16x8xf32>
    %12 = vector.shape_cast %11 : vector<16x8xf32> to vector<2x8x8xf32>
    %c0_13 = arith.constant 0 : index
    %c0_14 = arith.constant 0 : index
    %c0_15 = arith.constant 0 : index
    %13 = vector.load %arg5[%c0_13, %c0_14, %c0_15] : memref<4x16x8xbf16, #tpu.memory_space<vmem>>, vector<1x16x8xbf16>
    %14 = vector.shape_cast %13 : vector<1x16x8xbf16> to vector<16x8xbf16>
    %cst_16 = arith.constant dense<0.000000e+00> : vector<32x8xf32>
    %15 = tpu.matmul %3, %14, %cst_16 {dimension_numbers = #tpu.dot_dimension_numbers<[1], [0], [0], [1], [0, 0, 1, 1], [], []>} : vector<32x16xbf16>, vector<16x8xbf16>, vector<32x8xf32> -> vector<32x8xf32>
    %c0_17 = arith.constant 0 : index
    %c0_18 = arith.constant 0 : index
    %c0_19 = arith.constant 0 : index
    %16 = vector.load %arg6[%c0_17, %c0_18, %c0_19] : memref<4x1x8xf32, #tpu.memory_space<vmem>>, vector<1x1x8xf32>
    %17 = vector.shape_cast %16 : vector<1x1x8xf32> to vector<1x8xf32>
    %18 = vector.broadcast %17 : vector<1x8xf32> to vector<32x8xf32>
    %19 = arith.addf %15, %18 : vector<32x8xf32>
    %20 = vector.shape_cast %19 : vector<32x8xf32> to vector<2x16x8xf32>
    %c0_20 = arith.constant 0 : index
    %c0_21 = arith.constant 0 : index
    %c0_22 = arith.constant 0 : index
    %21 = vector.load %arg7[%c0_20, %c0_21, %c0_22] : memref<4x16x8xbf16, #tpu.memory_space<vmem>>, vector<1x16x8xbf16>
    %22 = vector.shape_cast %21 : vector<1x16x8xbf16> to vector<16x8xbf16>
    %cst_23 = arith.constant dense<0.000000e+00> : vector<32x8xf32>
    %23 = tpu.matmul %3, %22, %cst_23 {dimension_numbers = #tpu.dot_dimension_numbers<[1], [0], [0], [1], [0, 0, 1, 1], [], []>} : vector<32x16xbf16>, vector<16x8xbf16>, vector<32x8xf32> -> vector<32x8xf32>
    %c0_24 = arith.constant 0 : index
    %c0_25 = arith.constant 0 : index
    %c0_26 = arith.constant 0 : index
    %24 = vector.load %arg8[%c0_24, %c0_25, %c0_26] : memref<4x1x8xf32, #tpu.memory_space<vmem>>, vector<1x1x8xf32>
    %25 = vector.shape_cast %24 : vector<1x1x8xf32> to vector<1x8xf32>
    %26 = vector.broadcast %25 : vector<1x8xf32> to vector<32x8xf32>
    %27 = arith.addf %23, %26 : vector<32x8xf32>
    %28 = vector.shape_cast %27 : vector<32x8xf32> to vector<2x16x8xf32>
    %29 = arith.truncf %12 : vector<2x8x8xf32> to vector<2x8x8xbf16>
    %30 = arith.truncf %20 : vector<2x16x8xf32> to vector<2x16x8xbf16>
    "tpu.trace_start"() <{level = 10 : i32, message = "bqd,bkd->bqk"}> : () -> ()
    %cst_27 = arith.constant dense<0.000000e+00> : vector<2x8x16xf32>
    %31 = tpu.matmul %29, %30, %cst_27 {dimension_numbers = #tpu.dot_dimension_numbers<[2], [2], [1], [1], [0, 0, 0, 1, 1, 1], [0], [0]>} : vector<2x8x8xbf16>, vector<2x16x8xbf16>, vector<2x8x16xf32> -> vector<2x8x16xf32>
    "tpu.trace_stop"() : () -> ()
    %cst_28 = arith.constant 0.176776692 : f32
    %32 = vector.broadcast %cst_28 : f32 to vector<2x8x16xf32>
    %33 = arith.mulf %31, %32 : vector<2x8x16xf32>
    %cst_29 = arith.constant dense<0xFF800000> : vector<2x8xf32>
    %34 = vector.multi_reduction <maximumf>, %33, %cst_29 [2] : vector<2x8x16xf32> to vector<2x8xf32>
    %35 = vector.shape_cast %34 : vector<2x8xf32> to vector<2x8x1xf32>
    %36 = vector.broadcast %35 : vector<2x8x1xf32> to vector<2x8x16xf32>
    %37 = arith.subf %33, %36 : vector<2x8x16xf32>
    %38 = math.exp %37 : vector<2x8x16xf32>
    %cst_30 = arith.constant dense<0.000000e+00> : vector<2x8xf32>
    %39 = vector.multi_reduction <add>, %38, %cst_30 [2] : vector<2x8x16xf32> to vector<2x8xf32>
    %40 = vector.shape_cast %39 : vector<2x8xf32> to vector<2x8x1xf32>
    %41 = tpu.reciprocal %40 {approx = true} : vector<2x8x1xf32> -> vector<2x8x1xf32>
    %42 = vector.broadcast %41 : vector<2x8x1xf32> to vector<2x8x16xf32>
    %43 = arith.mulf %38, %42 : vector<2x8x16xf32>
    %44 = arith.truncf %43 : vector<2x8x16xf32> to vector<2x8x16xbf16>
    %45 = arith.truncf %28 : vector<2x16x8xf32> to vector<2x16x8xbf16>
    "tpu.trace_start"() <{level = 10 : i32, message = "bqk,bkd->bqd"}> : () -> ()
    %cst_31 = arith.constant dense<0.000000e+00> : vector<2x8x8xf32>
    %46 = tpu.matmul %44, %45, %cst_31 {dimension_numbers = #tpu.dot_dimension_numbers<[2], [1], [1], [2], [0, 0, 0, 1, 1, 2], [0], [0]>} : vector<2x8x16xbf16>, vector<2x16x8xbf16>, vector<2x8x8xf32> -> vector<2x8x8xf32>
    "tpu.trace_stop"() : () -> ()
    %47 = arith.addf %12, %46 : vector<2x8x8xf32>
    %48 = vector.shape_cast %47 : vector<2x8x8xf32> to vector<16x8xf32>
    %49 = arith.truncf %48 : vector<16x8xf32> to vector<16x8xbf16>
    %c0_32 = arith.constant 0 : index
    %c0_33 = arith.constant 0 : index
    %c0_34 = arith.constant 0 : index
    %50 = vector.load %arg9[%c0_32, %c0_33, %c0_34] : memref<4x8x32xbf16, #tpu.memory_space<vmem>>, vector<1x8x32xbf16>
    %51 = vector.shape_cast %50 : vector<1x8x32xbf16> to vector<8x32xbf16>
    %cst_35 = arith.constant dense<0.000000e+00> : vector<16x32xf32>
    %52 = tpu.matmul %49, %51, %cst_35 {dimension_numbers = #tpu.dot_dimension_numbers<[1], [0], [0], [1], [0, 0, 1, 1], [], []>} : vector<16x8xbf16>, vector<8x32xbf16>, vector<16x32xf32> -> vector<16x32xf32>
    %53 = vector.broadcast %4 : vector<1x32xf32> to vector<16x32xf32>
    %54 = arith.addf %53, %52 : vector<16x32xf32>
    %c1 = arith.constant 1 : index
    %c0_36 = arith.constant 0 : index
    %c0_37 = arith.constant 0 : index
    %55 = vector.load %arg3[%c1, %c0_36, %c0_37] : memref<4x32x8xbf16, #tpu.memory_space<vmem>>, vector<1x32x8xbf16>
    %56 = vector.shape_cast %55 : vector<1x32x8xbf16> to vector<32x8xbf16>
    %cst_38 = arith.constant dense<0.000000e+00> : vector<16x8xf32>
    %57 = tpu.matmul %1, %56, %cst_38 {dimension_numbers = #tpu.dot_dimension_numbers<[1], [0], [0], [1], [0, 0, 1, 1], [], []>} : vector<16x32xbf16>, vector<32x8xbf16>, vector<16x8xf32> -> vector<16x8xf32>
    %c1_39 = arith.constant 1 : index
    %c0_40 = arith.constant 0 : index
    %c0_41 = arith.constant 0 : index
    %58 = vector.load %arg4[%c1_39, %c0_40, %c0_41] : memref<4x1x8xf32, #tpu.memory_space<vmem>>, vector<1x1x8xf32>
    %59 = vector.shape_cast %58 : vector<1x1x8xf32> to vector<1x8xf32>
    %60 = vector.broadcast %59 : vector<1x8xf32> to vector<16x8xf32>
    %61 = arith.addf %57, %60 : vector<16x8xf32>
    %62 = vector.shape_cast %61 : vector<16x8xf32> to vector<2x8x8xf32>
    %c1_42 = arith.constant 1 : index
    %c0_43 = arith.constant 0 : index
    %c0_44 = arith.constant 0 : index
    %63 = vector.load %arg5[%c1_42, %c0_43, %c0_44] : memref<4x16x8xbf16, #tpu.memory_space<vmem>>, vector<1x16x8xbf16>
    %64 = vector.shape_cast %63 : vector<1x16x8xbf16> to vector<16x8xbf16>
    %cst_45 = arith.constant dense<0.000000e+00> : vector<32x8xf32>
    %65 = tpu.matmul %3, %64, %cst_45 {dimension_numbers = #tpu.dot_dimension_numbers<[1], [0], [0], [1], [0, 0, 1, 1], [], []>} : vector<32x16xbf16>, vector<16x8xbf16>, vector<32x8xf32> -> vector<32x8xf32>
    %c1_46 = arith.constant 1 : index
    %c0_47 = arith.constant 0 : index
    %c0_48 = arith.constant 0 : index
    %66 = vector.load %arg6[%c1_46, %c0_47, %c0_48] : memref<4x1x8xf32, #tpu.memory_space<vmem>>, vector<1x1x8xf32>
    %67 = vector.shape_cast %66 : vector<1x1x8xf32> to vector<1x8xf32>
    %68 = vector.broadcast %67 : vector<1x8xf32> to vector<32x8xf32>
    %69 = arith.addf %65, %68 : vector<32x8xf32>
    %70 = vector.shape_cast %69 : vector<32x8xf32> to vector<2x16x8xf32>
    %c1_49 = arith.constant 1 : index
    %c0_50 = arith.constant 0 : index
    %c0_51 = arith.constant 0 : index
    %71 = vector.load %arg7[%c1_49, %c0_50, %c0_51] : memref<4x16x8xbf16, #tpu.memory_space<vmem>>, vector<1x16x8xbf16>
    %72 = vector.shape_cast %71 : vector<1x16x8xbf16> to vector<16x8xbf16>
    %cst_52 = arith.constant dense<0.000000e+00> : vector<32x8xf32>
    %73 = tpu.matmul %3, %72, %cst_52 {dimension_numbers = #tpu.dot_dimension_numbers<[1], [0], [0], [1], [0, 0, 1, 1], [], []>} : vector<32x16xbf16>, vector<16x8xbf16>, vector<32x8xf32> -> vector<32x8xf32>
    %c1_53 = arith.constant 1 : index
    %c0_54 = arith.constant 0 : index
    %c0_55 = arith.constant 0 : index
    %74 = vector.load %arg8[%c1_53, %c0_54, %c0_55] : memref<4x1x8xf32, #tpu.memory_space<vmem>>, vector<1x1x8xf32>
    %75 = vector.shape_cast %74 : vector<1x1x8xf32> to vector<1x8xf32>
    %76 = vector.broadcast %75 : vector<1x8xf32> to vector<32x8xf32>
    %77 = arith.addf %73, %76 : vector<32x8xf32>
    %78 = vector.shape_cast %77 : vector<32x8xf32> to vector<2x16x8xf32>
    %79 = arith.truncf %62 : vector<2x8x8xf32> to vector<2x8x8xbf16>
    %80 = arith.truncf %70 : vector<2x16x8xf32> to vector<2x16x8xbf16>
    "tpu.trace_start"() <{level = 10 : i32, message = "bqd,bkd->bqk"}> : () -> ()
    %cst_56 = arith.constant dense<0.000000e+00> : vector<2x8x16xf32>
    %81 = tpu.matmul %79, %80, %cst_56 {dimension_numbers = #tpu.dot_dimension_numbers<[2], [2], [1], [1], [0, 0, 0, 1, 1, 1], [0], [0]>} : vector<2x8x8xbf16>, vector<2x16x8xbf16>, vector<2x8x16xf32> -> vector<2x8x16xf32>
    "tpu.trace_stop"() : () -> ()
    %cst_57 = arith.constant 0.176776692 : f32
    %82 = vector.broadcast %cst_57 : f32 to vector<2x8x16xf32>
    %83 = arith.mulf %81, %82 : vector<2x8x16xf32>
    %cst_58 = arith.constant dense<0xFF800000> : vector<2x8xf32>
    %84 = vector.multi_reduction <maximumf>, %83, %cst_58 [2] : vector<2x8x16xf32> to vector<2x8xf32>
    %85 = vector.shape_cast %84 : vector<2x8xf32> to vector<2x8x1xf32>
    %86 = vector.broadcast %85 : vector<2x8x1xf32> to vector<2x8x16xf32>
    %87 = arith.subf %83, %86 : vector<2x8x16xf32>
    %88 = math.exp %87 : vector<2x8x16xf32>
    %cst_59 = arith.constant dense<0.000000e+00> : vector<2x8xf32>
    %89 = vector.multi_reduction <add>, %88, %cst_59 [2] : vector<2x8x16xf32> to vector<2x8xf32>
    %90 = vector.shape_cast %89 : vector<2x8xf32> to vector<2x8x1xf32>
    %91 = tpu.reciprocal %90 {approx = true} : vector<2x8x1xf32> -> vector<2x8x1xf32>
    %92 = vector.broadcast %91 : vector<2x8x1xf32> to vector<2x8x16xf32>
    %93 = arith.mulf %88, %92 : vector<2x8x16xf32>
    %94 = arith.truncf %93 : vector<2x8x16xf32> to vector<2x8x16xbf16>
    %95 = arith.truncf %78 : vector<2x16x8xf32> to vector<2x16x8xbf16>
    "tpu.trace_start"() <{level = 10 : i32, message = "bqk,bkd->bqd"}> : () -> ()
    %cst_60 = arith.constant dense<0.000000e+00> : vector<2x8x8xf32>
    %96 = tpu.matmul %94, %95, %cst_60 {dimension_numbers = #tpu.dot_dimension_numbers<[2], [1], [1], [2], [0, 0, 0, 1, 1, 2], [0], [0]>} : vector<2x8x16xbf16>, vector<2x16x8xbf16>, vector<2x8x8xf32> -> vector<2x8x8xf32>
    "tpu.trace_stop"() : () -> ()
    %97 = arith.addf %62, %96 : vector<2x8x8xf32>
    %98 = vector.shape_cast %97 : vector<2x8x8xf32> to vector<16x8xf32>
    %99 = arith.truncf %98 : vector<16x8xf32> to vector<16x8xbf16>
    %c1_61 = arith.constant 1 : index
    %c0_62 = arith.constant 0 : index
    %c0_63 = arith.constant 0 : index
    %100 = vector.load %arg9[%c1_61, %c0_62, %c0_63] : memref<4x8x32xbf16, #tpu.memory_space<vmem>>, vector<1x8x32xbf16>
    %101 = vector.shape_cast %100 : vector<1x8x32xbf16> to vector<8x32xbf16>
    %cst_64 = arith.constant dense<0.000000e+00> : vector<16x32xf32>
    %102 = tpu.matmul %99, %101, %cst_64 {dimension_numbers = #tpu.dot_dimension_numbers<[1], [0], [0], [1], [0, 0, 1, 1], [], []>} : vector<16x8xbf16>, vector<8x32xbf16>, vector<16x32xf32> -> vector<16x32xf32>
    %103 = arith.addf %54, %102 : vector<16x32xf32>
    %c2 = arith.constant 2 : index
    %c0_65 = arith.constant 0 : index
    %c0_66 = arith.constant 0 : index
    %104 = vector.load %arg3[%c2, %c0_65, %c0_66] : memref<4x32x8xbf16, #tpu.memory_space<vmem>>, vector<1x32x8xbf16>
    %105 = vector.shape_cast %104 : vector<1x32x8xbf16> to vector<32x8xbf16>
    %cst_67 = arith.constant dense<0.000000e+00> : vector<16x8xf32>
    %106 = tpu.matmul %1, %105, %cst_67 {dimension_numbers = #tpu.dot_dimension_numbers<[1], [0], [0], [1], [0, 0, 1, 1], [], []>} : vector<16x32xbf16>, vector<32x8xbf16>, vector<16x8xf32> -> vector<16x8xf32>
    %c2_68 = arith.constant 2 : index
    %c0_69 = arith.constant 0 : index
    %c0_70 = arith.constant 0 : index
    %107 = vector.load %arg4[%c2_68, %c0_69, %c0_70] : memref<4x1x8xf32, #tpu.memory_space<vmem>>, vector<1x1x8xf32>
    %108 = vector.shape_cast %107 : vector<1x1x8xf32> to vector<1x8xf32>
    %109 = vector.broadcast %108 : vector<1x8xf32> to vector<16x8xf32>
    %110 = arith.addf %106, %109 : vector<16x8xf32>
    %111 = vector.shape_cast %110 : vector<16x8xf32> to vector<2x8x8xf32>
    %c2_71 = arith.constant 2 : index
    %c0_72 = arith.constant 0 : index
    %c0_73 = arith.constant 0 : index
    %112 = vector.load %arg5[%c2_71, %c0_72, %c0_73] : memref<4x16x8xbf16, #tpu.memory_space<vmem>>, vector<1x16x8xbf16>
    %113 = vector.shape_cast %112 : vector<1x16x8xbf16> to vector<16x8xbf16>
    %cst_74 = arith.constant dense<0.000000e+00> : vector<32x8xf32>
    %114 = tpu.matmul %3, %113, %cst_74 {dimension_numbers = #tpu.dot_dimension_numbers<[1], [0], [0], [1], [0, 0, 1, 1], [], []>} : vector<32x16xbf16>, vector<16x8xbf16>, vector<32x8xf32> -> vector<32x8xf32>
    %c2_75 = arith.constant 2 : index
    %c0_76 = arith.constant 0 : index
    %c0_77 = arith.constant 0 : index
    %115 = vector.load %arg6[%c2_75, %c0_76, %c0_77] : memref<4x1x8xf32, #tpu.memory_space<vmem>>, vector<1x1x8xf32>
    %116 = vector.shape_cast %115 : vector<1x1x8xf32> to vector<1x8xf32>
    %117 = vector.broadcast %116 : vector<1x8xf32> to vector<32x8xf32>
    %118 = arith.addf %114, %117 : vector<32x8xf32>
    %119 = vector.shape_cast %118 : vector<32x8xf32> to vector<2x16x8xf32>
    %c2_78 = arith.constant 2 : index
    %c0_79 = arith.constant 0 : index
    %c0_80 = arith.constant 0 : index
    %120 = vector.load %arg7[%c2_78, %c0_79, %c0_80] : memref<4x16x8xbf16, #tpu.memory_space<vmem>>, vector<1x16x8xbf16>
    %121 = vector.shape_cast %120 : vector<1x16x8xbf16> to vector<16x8xbf16>
    %cst_81 = arith.constant dense<0.000000e+00> : vector<32x8xf32>
    %122 = tpu.matmul %3, %121, %cst_81 {dimension_numbers = #tpu.dot_dimension_numbers<[1], [0], [0], [1], [0, 0, 1, 1], [], []>} : vector<32x16xbf16>, vector<16x8xbf16>, vector<32x8xf32> -> vector<32x8xf32>
    %c2_82 = arith.constant 2 : index
    %c0_83 = arith.constant 0 : index
    %c0_84 = arith.constant 0 : index
    %123 = vector.load %arg8[%c2_82, %c0_83, %c0_84] : memref<4x1x8xf32, #tpu.memory_space<vmem>>, vector<1x1x8xf32>
    %124 = vector.shape_cast %123 : vector<1x1x8xf32> to vector<1x8xf32>
    %125 = vector.broadcast %124 : vector<1x8xf32> to vector<32x8xf32>
    %126 = arith.addf %122, %125 : vector<32x8xf32>
    %127 = vector.shape_cast %126 : vector<32x8xf32> to vector<2x16x8xf32>
    %128 = arith.truncf %111 : vector<2x8x8xf32> to vector<2x8x8xbf16>
    %129 = arith.truncf %119 : vector<2x16x8xf32> to vector<2x16x8xbf16>
    "tpu.trace_start"() <{level = 10 : i32, message = "bqd,bkd->bqk"}> : () -> ()
    %cst_85 = arith.constant dense<0.000000e+00> : vector<2x8x16xf32>
    %130 = tpu.matmul %128, %129, %cst_85 {dimension_numbers = #tpu.dot_dimension_numbers<[2], [2], [1], [1], [0, 0, 0, 1, 1, 1], [0], [0]>} : vector<2x8x8xbf16>, vector<2x16x8xbf16>, vector<2x8x16xf32> -> vector<2x8x16xf32>
    "tpu.trace_stop"() : () -> ()
    %cst_86 = arith.constant 0.176776692 : f32
    %131 = vector.broadcast %cst_86 : f32 to vector<2x8x16xf32>
    %132 = arith.mulf %130, %131 : vector<2x8x16xf32>
    %cst_87 = arith.constant dense<0xFF800000> : vector<2x8xf32>
    %133 = vector.multi_reduction <maximumf>, %132, %cst_87 [2] : vector<2x8x16xf32> to vector<2x8xf32>
    %134 = vector.shape_cast %133 : vector<2x8xf32> to vector<2x8x1xf32>
    %135 = vector.broadcast %134 : vector<2x8x1xf32> to vector<2x8x16xf32>
    %136 = arith.subf %132, %135 : vector<2x8x16xf32>
    %137 = math.exp %136 : vector<2x8x16xf32>
    %cst_88 = arith.constant dense<0.000000e+00> : vector<2x8xf32>
    %138 = vector.multi_reduction <add>, %137, %cst_88 [2] : vector<2x8x16xf32> to vector<2x8xf32>
    %139 = vector.shape_cast %138 : vector<2x8xf32> to vector<2x8x1xf32>
    %140 = tpu.reciprocal %139 {approx = true} : vector<2x8x1xf32> -> vector<2x8x1xf32>
    %141 = vector.broadcast %140 : vector<2x8x1xf32> to vector<2x8x16xf32>
    %142 = arith.mulf %137, %141 : vector<2x8x16xf32>
    %143 = arith.truncf %142 : vector<2x8x16xf32> to vector<2x8x16xbf16>
    %144 = arith.truncf %127 : vector<2x16x8xf32> to vector<2x16x8xbf16>
    "tpu.trace_start"() <{level = 10 : i32, message = "bqk,bkd->bqd"}> : () -> ()
    %cst_89 = arith.constant dense<0.000000e+00> : vector<2x8x8xf32>
    %145 = tpu.matmul %143, %144, %cst_89 {dimension_numbers = #tpu.dot_dimension_numbers<[2], [1], [1], [2], [0, 0, 0, 1, 1, 2], [0], [0]>} : vector<2x8x16xbf16>, vector<2x16x8xbf16>, vector<2x8x8xf32> -> vector<2x8x8xf32>
    "tpu.trace_stop"() : () -> ()
    %146 = arith.addf %111, %145 : vector<2x8x8xf32>
    %147 = vector.shape_cast %146 : vector<2x8x8xf32> to vector<16x8xf32>
    %148 = arith.truncf %147 : vector<16x8xf32> to vector<16x8xbf16>
    %c2_90 = arith.constant 2 : index
    %c0_91 = arith.constant 0 : index
    %c0_92 = arith.constant 0 : index
    %149 = vector.load %arg9[%c2_90, %c0_91, %c0_92] : memref<4x8x32xbf16, #tpu.memory_space<vmem>>, vector<1x8x32xbf16>
    %150 = vector.shape_cast %149 : vector<1x8x32xbf16> to vector<8x32xbf16>
    %cst_93 = arith.constant dense<0.000000e+00> : vector<16x32xf32>
    %151 = tpu.matmul %148, %150, %cst_93 {dimension_numbers = #tpu.dot_dimension_numbers<[1], [0], [0], [1], [0, 0, 1, 1], [], []>} : vector<16x8xbf16>, vector<8x32xbf16>, vector<16x32xf32> -> vector<16x32xf32>
    %152 = arith.addf %103, %151 : vector<16x32xf32>
    %c3 = arith.constant 3 : index
    %c0_94 = arith.constant 0 : index
    %c0_95 = arith.constant 0 : index
    %153 = vector.load %arg3[%c3, %c0_94, %c0_95] : memref<4x32x8xbf16, #tpu.memory_space<vmem>>, vector<1x32x8xbf16>
    %154 = vector.shape_cast %153 : vector<1x32x8xbf16> to vector<32x8xbf16>
    %cst_96 = arith.constant dense<0.000000e+00> : vector<16x8xf32>
    %155 = tpu.matmul %1, %154, %cst_96 {dimension_numbers = #tpu.dot_dimension_numbers<[1], [0], [0], [1], [0, 0, 1, 1], [], []>} : vector<16x32xbf16>, vector<32x8xbf16>, vector<16x8xf32> -> vector<16x8xf32>
    %c3_97 = arith.constant 3 : index
    %c0_98 = arith.constant 0 : index
    %c0_99 = arith.constant 0 : index
    %156 = vector.load %arg4[%c3_97, %c0_98, %c0_99] : memref<4x1x8xf32, #tpu.memory_space<vmem>>, vector<1x1x8xf32>
    %157 = vector.shape_cast %156 : vector<1x1x8xf32> to vector<1x8xf32>
    %158 = vector.broadcast %157 : vector<1x8xf32> to vector<16x8xf32>
    %159 = arith.addf %155, %158 : vector<16x8xf32>
    %160 = vector.shape_cast %159 : vector<16x8xf32> to vector<2x8x8xf32>
    %c3_100 = arith.constant 3 : index
    %c0_101 = arith.constant 0 : index
    %c0_102 = arith.constant 0 : index
    %161 = vector.load %arg5[%c3_100, %c0_101, %c0_102] : memref<4x16x8xbf16, #tpu.memory_space<vmem>>, vector<1x16x8xbf16>
    %162 = vector.shape_cast %161 : vector<1x16x8xbf16> to vector<16x8xbf16>
    %cst_103 = arith.constant dense<0.000000e+00> : vector<32x8xf32>
    %163 = tpu.matmul %3, %162, %cst_103 {dimension_numbers = #tpu.dot_dimension_numbers<[1], [0], [0], [1], [0, 0, 1, 1], [], []>} : vector<32x16xbf16>, vector<16x8xbf16>, vector<32x8xf32> -> vector<32x8xf32>
    %c3_104 = arith.constant 3 : index
    %c0_105 = arith.constant 0 : index
    %c0_106 = arith.constant 0 : index
    %164 = vector.load %arg6[%c3_104, %c0_105, %c0_106] : memref<4x1x8xf32, #tpu.memory_space<vmem>>, vector<1x1x8xf32>
    %165 = vector.shape_cast %164 : vector<1x1x8xf32> to vector<1x8xf32>
    %166 = vector.broadcast %165 : vector<1x8xf32> to vector<32x8xf32>
    %167 = arith.addf %163, %166 : vector<32x8xf32>
    %168 = vector.shape_cast %167 : vector<32x8xf32> to vector<2x16x8xf32>
    %c3_107 = arith.constant 3 : index
    %c0_108 = arith.constant 0 : index
    %c0_109 = arith.constant 0 : index
    %169 = vector.load %arg7[%c3_107, %c0_108, %c0_109] : memref<4x16x8xbf16, #tpu.memory_space<vmem>>, vector<1x16x8xbf16>
    %170 = vector.shape_cast %169 : vector<1x16x8xbf16> to vector<16x8xbf16>
    %cst_110 = arith.constant dense<0.000000e+00> : vector<32x8xf32>
    %171 = tpu.matmul %3, %170, %cst_110 {dimension_numbers = #tpu.dot_dimension_numbers<[1], [0], [0], [1], [0, 0, 1, 1], [], []>} : vector<32x16xbf16>, vector<16x8xbf16>, vector<32x8xf32> -> vector<32x8xf32>
    %c3_111 = arith.constant 3 : index
    %c0_112 = arith.constant 0 : index
    %c0_113 = arith.constant 0 : index
    %172 = vector.load %arg8[%c3_111, %c0_112, %c0_113] : memref<4x1x8xf32, #tpu.memory_space<vmem>>, vector<1x1x8xf32>
    %173 = vector.shape_cast %172 : vector<1x1x8xf32> to vector<1x8xf32>
    %174 = vector.broadcast %173 : vector<1x8xf32> to vector<32x8xf32>
    %175 = arith.addf %171, %174 : vector<32x8xf32>
    %176 = vector.shape_cast %175 : vector<32x8xf32> to vector<2x16x8xf32>
    %177 = arith.truncf %160 : vector<2x8x8xf32> to vector<2x8x8xbf16>
    %178 = arith.truncf %168 : vector<2x16x8xf32> to vector<2x16x8xbf16>
    "tpu.trace_start"() <{level = 10 : i32, message = "bqd,bkd->bqk"}> : () -> ()
    %cst_114 = arith.constant dense<0.000000e+00> : vector<2x8x16xf32>
    %179 = tpu.matmul %177, %178, %cst_114 {dimension_numbers = #tpu.dot_dimension_numbers<[2], [2], [1], [1], [0, 0, 0, 1, 1, 1], [0], [0]>} : vector<2x8x8xbf16>, vector<2x16x8xbf16>, vector<2x8x16xf32> -> vector<2x8x16xf32>
    "tpu.trace_stop"() : () -> ()
    %cst_115 = arith.constant 0.176776692 : f32
    %180 = vector.broadcast %cst_115 : f32 to vector<2x8x16xf32>
    %181 = arith.mulf %179, %180 : vector<2x8x16xf32>
    %cst_116 = arith.constant dense<0xFF800000> : vector<2x8xf32>
    %182 = vector.multi_reduction <maximumf>, %181, %cst_116 [2] : vector<2x8x16xf32> to vector<2x8xf32>
    %183 = vector.shape_cast %182 : vector<2x8xf32> to vector<2x8x1xf32>
    %184 = vector.broadcast %183 : vector<2x8x1xf32> to vector<2x8x16xf32>
    %185 = arith.subf %181, %184 : vector<2x8x16xf32>
    %186 = math.exp %185 : vector<2x8x16xf32>
    %cst_117 = arith.constant dense<0.000000e+00> : vector<2x8xf32>
    %187 = vector.multi_reduction <add>, %186, %cst_117 [2] : vector<2x8x16xf32> to vector<2x8xf32>
    %188 = vector.shape_cast %187 : vector<2x8xf32> to vector<2x8x1xf32>
    %189 = tpu.reciprocal %188 {approx = true} : vector<2x8x1xf32> -> vector<2x8x1xf32>
    %190 = vector.broadcast %189 : vector<2x8x1xf32> to vector<2x8x16xf32>
    %191 = arith.mulf %186, %190 : vector<2x8x16xf32>
    %192 = arith.truncf %191 : vector<2x8x16xf32> to vector<2x8x16xbf16>
    %193 = arith.truncf %176 : vector<2x16x8xf32> to vector<2x16x8xbf16>
    "tpu.trace_start"() <{level = 10 : i32, message = "bqk,bkd->bqd"}> : () -> ()
    %cst_118 = arith.constant dense<0.000000e+00> : vector<2x8x8xf32>
    %194 = tpu.matmul %192, %193, %cst_118 {dimension_numbers = #tpu.dot_dimension_numbers<[2], [1], [1], [2], [0, 0, 0, 1, 1, 2], [0], [0]>} : vector<2x8x16xbf16>, vector<2x16x8xbf16>, vector<2x8x8xf32> -> vector<2x8x8xf32>
    "tpu.trace_stop"() : () -> ()
    %195 = arith.addf %160, %194 : vector<2x8x8xf32>
    %196 = vector.shape_cast %195 : vector<2x8x8xf32> to vector<16x8xf32>
    %197 = arith.truncf %196 : vector<16x8xf32> to vector<16x8xbf16>
    %c3_119 = arith.constant 3 : index
    %c0_120 = arith.constant 0 : index
    %c0_121 = arith.constant 0 : index
    %198 = vector.load %arg9[%c3_119, %c0_120, %c0_121] : memref<4x8x32xbf16, #tpu.memory_space<vmem>>, vector<1x8x32xbf16>
    %199 = vector.shape_cast %198 : vector<1x8x32xbf16> to vector<8x32xbf16>
    %cst_122 = arith.constant dense<0.000000e+00> : vector<16x32xf32>
    %200 = tpu.matmul %197, %199, %cst_122 {dimension_numbers = #tpu.dot_dimension_numbers<[1], [0], [0], [1], [0, 0, 1, 1], [], []>} : vector<16x8xbf16>, vector<8x32xbf16>, vector<16x32xf32> -> vector<16x32xf32>
    %201 = arith.addf %152, %200 : vector<16x32xf32>
    %202 = tpu.concatenate %47, %97, %146, %195 in 2 : vector<2x8x8xf32>, vector<2x8x8xf32>, vector<2x8x8xf32>, vector<2x8x8xf32> -> vector<2x8x32xf32>
    %203 = arith.negf %201 : vector<16x32xf32>
    %204 = math.exp %203 : vector<16x32xf32>
    %cst_123 = arith.constant 1.000000e+00 : f32
    %205 = vector.broadcast %cst_123 : f32 to vector<16x32xf32>
    %206 = arith.addf %205, %204 : vector<16x32xf32>
    %207 = arith.divf %205, %206 : vector<16x32xf32>
    %208 = vector.shape_cast %207 : vector<16x32xf32> to vector<2x8x32xf32>
    %209 = arith.addf %202, %208 : vector<2x8x32xf32>
    %c0_124 = arith.constant 0 : index
    %c0_125 = arith.constant 0 : index
    %c0_126 = arith.constant 0 : index
    %210 = vector.load %arg11[%c0_124, %c0_125, %c0_126] : memref<2x8x32xf32, #tpu.memory_space<vmem>>, vector<2x8x32xf32>
    tpu.vector_store %arg11[%c0_124, %c0_125, %c0_126], %209 {strides = array<i32>} : memref<2x8x32xf32, #tpu.memory_space<vmem>>, vector<2x8x32xf32>,
    return
  }
  func.func @transform_0(%arg0: i32) -> (i32, i32, i32) {
    %c0_i32 = arith.constant 0 : i32
    %c0_i32_0 = arith.constant 0 : i32
    %c0_i32_1 = arith.constant 0 : i32
    return %arg0, %c0_i32, %c0_i32_0 : i32, i32, i32
  }
  func.func @transform_1(%arg0: i32) -> (i32, i32, i32) {
    %c0_i32 = arith.constant 0 : i32
    %c0_i32_0 = arith.constant 0 : i32
    %c0_i32_1 = arith.constant 0 : i32
    return %arg0, %c0_i32, %c0_i32_0 : i32, i32, i32
  }
  func.func @transform_2(%arg0: i32) -> (i32, i32, i32) {
    %c0_i32 = arith.constant 0 : i32
    %c0_i32_0 = arith.constant 0 : i32
    %c0_i32_1 = arith.constant 0 : i32
    %c0_i32_2 = arith.constant 0 : i32
    return %c0_i32, %c0_i32_0, %c0_i32_1 : i32, i32, i32
  }
  func.func @transform_3(%arg0: i32) -> (i32, i32, i32) {
    %c0_i32 = arith.constant 0 : i32
    %c0_i32_0 = arith.constant 0 : i32
    %c0_i32_1 = arith.constant 0 : i32
    %c0_i32_2 = arith.constant 0 : i32
    return %c0_i32, %c0_i32_0, %c0_i32_1 : i32, i32, i32
  }
  func.func @transform_4(%arg0: i32) -> (i32, i32, i32) {
    %c0_i32 = arith.constant 0 : i32
    %c0_i32_0 = arith.constant 0 : i32
    %c0_i32_1 = arith.constant 0 : i32
    %c0_i32_2 = arith.constant 0 : i32
    return %c0_i32, %c0_i32_0, %c0_i32_1 : i32, i32, i32
  }
  func.func @transform_5(%arg0: i32) -> (i32, i32, i32) {
    %c0_i32 = arith.constant 0 : i32
    %c0_i32_0 = arith.constant 0 : i32
    %c0_i32_1 = arith.constant 0 : i32
    %c0_i32_2 = arith.constant 0 : i32
    return %c0_i32, %c0_i32_0, %c0_i32_1 : i32, i32, i32
  }
  func.func @transform_6(%arg0: i32) -> (i32, i32, i32) {
    %c0_i32 = arith.constant 0 : i32
    %c0_i32_0 = arith.constant 0 : i32
    %c0_i32_1 = arith.constant 0 : i32
    %c0_i32_2 = arith.constant 0 : i32
    return %c0_i32, %c0_i32_0, %c0_i32_1 : i32, i32, i32
  }
  func.func @transform_7(%arg0: i32) -> (i32, i32, i32) {
    %c0_i32 = arith.constant 0 : i32
    %c0_i32_0 = arith.constant 0 : i32
    %c0_i32_1 = arith.constant 0 : i32
    %c0_i32_2 = arith.constant 0 : i32
    return %c0_i32, %c0_i32_0, %c0_i32_1 : i32, i32, i32
  }
  func.func @transform_8(%arg0: i32) -> (i32, i32, i32) {
    %c0_i32 = arith.constant 0 : i32
    %c0_i32_0 = arith.constant 0 : i32
    %c0_i32_1 = arith.constant 0 : i32
    %c0_i32_2 = arith.constant 0 : i32
    return %c0_i32, %c0_i32_0, %c0_i32_1 : i32, i32, i32
  }
  func.func @transform_9(%arg0: i32) -> (i32, i32) {
    %c0_i32 = arith.constant 0 : i32
    %c0_i32_0 = arith.constant 0 : i32
    %c0_i32_1 = arith.constant 0 : i32
    return %c0_i32, %c0_i32_0 : i32, i32
  }
  func.func @transform_10(%arg0: i32) -> (i32, i32, i32) {
    %c0_i32 = arith.constant 0 : i32
    %c0_i32_0 = arith.constant 0 : i32
    %c0_i32_1 = arith.constant 0 : i32
    return %arg0, %c0_i32, %c0_i32_0 : i32, i32, i32
  }
}

</mosaic_0001>

<llo_original>
// kernel: tpu_custom_call.1
$region0: #{tpu_custom_call.1}
  #allocation0 [shape = 'u32[]', space=smem, size = 0x4, offset = 0x4, fixed_abs, tag = 'smem constant byte address 0x4 - core index']
  #allocation1 [shape = 'u32[144,128]{1,0:T(1,128)}', space=vmem, size = 0x12000, scoped, tag = 'internal scratch']
  %s0 = inlined_call_operand.vmem [shape: bf16[4,8,32], index: 0, kind: input, shape index: {}]
  %s1 = inlined_call_operand.vmem [shape: bf16[4,16,16], index: 1, kind: input, shape index: {}]
  %s2 = inlined_call_operand.vmem [shape: bf16[4,32,8], index: 2, kind: input, shape index: {}]
  %s3 = inlined_call_operand.vmem [shape: f32[4,1,8], index: 3, kind: input, shape index: {}]
  %s4 = inlined_call_operand.vmem [shape: bf16[4,16,8], index: 4, kind: input, shape index: {}]
  %s5 = inlined_call_operand.vmem [shape: f32[4,1,8], index: 5, kind: input, shape index: {}]
  %s6 = inlined_call_operand.vmem [shape: bf16[4,16,8], index: 6, kind: input, shape index: {}]
  %s7 = inlined_call_operand.vmem [shape: f32[4,1,8], index: 7, kind: input, shape index: {}]
  %s8 = inlined_call_operand.vmem [shape: bf16[4,8,32], index: 8, kind: input, shape index: {}]
  %s9 = inlined_call_operand.vmem [shape: f32[1,32], index: 9, kind: input, shape index: {}]
  %s10 = inlined_call_operand.hbm [shape: f32[4,8,32], index: 10, kind: output, shape index: {}]
  %s11 = sld [smem:[#allocation0]]
  $region73: #{tpu_custom_call.1} parent=0
    _
  %s13 = ssub.s32 1, %s11
  %s14 = scalar_select 0, %s13, %s11
  $region1: #{tpu_custom_call.1} parent=0
    #allocation2 [shape = 'u8[16384]{0}', space=vmem, size = 0x4000, scoped, tag = 'output window, operand 0']
    #allocation3 [shape = 's32[2]{0}', space=sflag, size = 0x8, scoped, tag = 'scoped memory for tpu_custom_call.1']
    %15 = vsyncpa [#allocation3], 0
    %s16 = scalar_lea.sflag [#allocation3], 1
    %17 = vsyncpa %s16, 0
    loop: start=0, step=1, limit=4
    $region2: #{tpu_custom_call.1} parent=1 // loop_pre_header
      _
    $region3: #{tpu_custom_call.1} parent=1 // loop_header
      %s19 = sphi 0, %s23
      %p20 = scmp.ge.s32.totalorder %s19, 4
      %s29 = sphi 0, %s31
      %s32 = sphi 0, %s29
      %s33 = sphi 0, %s32
      %s49 = sphi 0, %s33
      %s55 = sphi 0, %s57
      %s58 = sphi 0, %s55
      %s59 = sphi 0, %s58
      %s75 = sphi 0, %s59
      %s79 = sphi 0, %s79
      %s81 = sphi 0, %s79
      %s82 = sphi 0, %s81
      %s96 = sphi 0, %s82
      %s100 = sphi 0, %s100
      %s102 = sphi 0, %s100
      %s103 = sphi 0, %s102
      %s117 = sphi 0, %s103
      %s121 = sphi 0, %s121
      %s123 = sphi 0, %s121
      %s124 = sphi 0, %s123
      %s138 = sphi 0, %s124
      %s142 = sphi 0, %s142
      %s144 = sphi 0, %s142
      %s145 = sphi 0, %s144
      %s159 = sphi 0, %s145
      %s163 = sphi 0, %s163
      %s165 = sphi 0, %s163
      %s166 = sphi 0, %s165
      %s180 = sphi 0, %s166
      %s184 = sphi 0, %s184
      %s186 = sphi 0, %s184
      %s187 = sphi 0, %s186
      %s201 = sphi 0, %s187
      %s205 = sphi 0, %s205
      %s207 = sphi 0, %s205
      %s208 = sphi 0, %s207
      %s222 = sphi 0, %s208
      %s226 = sphi 0, %s226
      %s228 = sphi 0, %s226
      %s229 = sphi 0, %s228
      %s243 = sphi 0, %s229
      %s249 = sphi 0, %s251
      %s252 = sphi 0, %s249
      %s253 = sphi 0, %s252
      %s269 = sphi 0, %s253
    $region4: #{tpu_custom_call.1} parent=1 // loop_header_branch
      %22 = sbr.rel (%p20) target = $region8
    $region5: #{tpu_custom_call.1} parent=1 // loop_body
      %s24 = ssub.s32 %s19, 1
      %s25 = ssub.s32 %s19, 2
      %s26 = sadd.s32 %s19, 1
      %s27 = ssub.s32 %s19, %s26
      %p28 = scmp.eq.s32.totalorder %s27, 0
      %s30 = sadd.s32 %s29, 1
      %s31 = scalar_select %p28, %s29, %s30
      %p34 = pneg %p28
      %p35 = scmp.eq.s32.totalorder %s19, 1
      %p36 = por %p34, %p35
      %p37 = scmp.ne.s32.totalorder %s29, %s32
      %p38 = scmp.eq.s32.totalorder %s19, 0
      %p39 = por %p37, %p38
      %p40 = scmp.ne.s32.totalorder %s29, %s32
      %p41 = scmp.eq.s32.totalorder %s24, 1
      %p42 = por %p40, %p41
      %p43 = scmp.ne.s32.totalorder %s32, %s33
      %p44 = scmp.eq.s32.totalorder %s24, 0
      %p45 = por %p43, %p44
      %p46 = scmp.ne.s32.totalorder %s32, %s33
      %p47 = scmp.eq.s32.totalorder %s25, 1
      %p48 = por %p46, %p47
      %p50 = scmp.ne.s32.totalorder %s33, %s49
      %p51 = scmp.eq.s32.totalorder %s25, 0
      %p52 = por %p50, %p51
      %s53 = ssub.s32 %s19, %s26
      %p54 = scmp.eq.s32.totalorder %s53, 0
      %s56 = sadd.s32 %s55, 1
      %s57 = scalar_select %p54, %s55, %s56
      %p60 = pneg %p54
      %p61 = scmp.eq.s32.totalorder %s19, 1
      %p62 = por %p60, %p61
      %p63 = scmp.ne.s32.totalorder %s55, %s58
      %p64 = scmp.eq.s32.totalorder %s19, 0
      %p65 = por %p63, %p64
      %p66 = scmp.ne.s32.totalorder %s55, %s58
      %p67 = scmp.eq.s32.totalorder %s24, 1
      %p68 = por %p66, %p67
      %p69 = scmp.ne.s32.totalorder %s58, %s59
      %p70 = scmp.eq.s32.totalorder %s24, 0
      %p71 = por %p69, %p70
      %p72 = scmp.ne.s32.totalorder %s58, %s59
      %p73 = scmp.eq.s32.totalorder %s25, 1
      %p74 = por %p72, %p73
      %p76 = scmp.ne.s32.totalorder %s59, %s75
      %p77 = scmp.eq.s32.totalorder %s25, 0
      %p78 = por %p76, %p77
      %s80 = sadd.s32 %s79, 1
      %p83 = scmp.eq.s32.totalorder %s19, 1
      %p84 = scmp.ne.s32.totalorder %s79, %s81
      %p85 = scmp.eq.s32.totalorder %s19, 0
      %p86 = por %p84, %p85
      %p87 = scmp.ne.s32.totalorder %s79, %s81
      %p88 = scmp.eq.s32.totalorder %s24, 1
      %p89 = por %p87, %p88
      %p90 = scmp.ne.s32.totalorder %s81, %s82
      %p91 = scmp.eq.s32.totalorder %s24, 0
      %p92 = por %p90, %p91
      %p93 = scmp.ne.s32.totalorder %s81, %s82
      %p94 = scmp.eq.s32.totalorder %s25, 1
      %p95 = por %p93, %p94
      %p97 = scmp.ne.s32.totalorder %s82, %s96
      %p98 = scmp.eq.s32.totalorder %s25, 0
      %p99 = por %p97, %p98
      %s101 = sadd.s32 %s100, 1
      %p104 = scmp.eq.s32.totalorder %s19, 1
      %p105 = scmp.ne.s32.totalorder %s100, %s102
      %p106 = scmp.eq.s32.totalorder %s19, 0
      %p107 = por %p105, %p106
      %p108 = scmp.ne.s32.totalorder %s100, %s102
      %p109 = scmp.eq.s32.totalorder %s24, 1
      %p110 = por %p108, %p109
      %p111 = scmp.ne.s32.totalorder %s102, %s103
      %p112 = scmp.eq.s32.totalorder %s24, 0
      %p113 = por %p111, %p112
      %p114 = scmp.ne.s32.totalorder %s102, %s103
      %p115 = scmp.eq.s32.totalorder %s25, 1
      %p116 = por %p114, %p115
      %p118 = scmp.ne.s32.totalorder %s103, %s117
      %p119 = scmp.eq.s32.totalorder %s25, 0
      %p120 = por %p118, %p119
      %s122 = sadd.s32 %s121, 1
      %p125 = scmp.eq.s32.totalorder %s19, 1
      %p126 = scmp.ne.s32.totalorder %s121, %s123
      %p127 = scmp.eq.s32.totalorder %s19, 0
      %p128 = por %p126, %p127
      %p129 = scmp.ne.s32.totalorder %s121, %s123
      %p130 = scmp.eq.s32.totalorder %s24, 1
      %p131 = por %p129, %p130
      %p132 = scmp.ne.s32.totalorder %s123, %s124
      %p133 = scmp.eq.s32.totalorder %s24, 0
      %p134 = por %p132, %p133
      %p135 = scmp.ne.s32.totalorder %s123, %s124
      %p136 = scmp.eq.s32.totalorder %s25, 1
      %p137 = por %p135, %p136
      %p139 = scmp.ne.s32.totalorder %s124, %s138
      %p140 = scmp.eq.s32.totalorder %s25, 0
      %p141 = por %p139, %p140
      %s143 = sadd.s32 %s142, 1
      %p146 = scmp.eq.s32.totalorder %s19, 1
      %p147 = scmp.ne.s32.totalorder %s142, %s144
      %p148 = scmp.eq.s32.totalorder %s19, 0
      %p149 = por %p147, %p148
      %p150 = scmp.ne.s32.totalorder %s142, %s144
      %p151 = scmp.eq.s32.totalorder %s24, 1
      %p152 = por %p150, %p151
      %p153 = scmp.ne.s32.totalorder %s144, %s145
      %p154 = scmp.eq.s32.totalorder %s24, 0
      %p155 = por %p153, %p154
      %p156 = scmp.ne.s32.totalorder %s144, %s145
      %p157 = scmp.eq.s32.totalorder %s25, 1
      %p158 = por %p156, %p157
      %p160 = scmp.ne.s32.totalorder %s145, %s159
      %p161 = scmp.eq.s32.totalorder %s25, 0
      %p162 = por %p160, %p161
      %s164 = sadd.s32 %s163, 1
      %p167 = scmp.eq.s32.totalorder %s19, 1
      %p168 = scmp.ne.s32.totalorder %s163, %s165
      %p169 = scmp.eq.s32.totalorder %s19, 0
      %p170 = por %p168, %p169
      %p171 = scmp.ne.s32.totalorder %s163, %s165
      %p172 = scmp.eq.s32.totalorder %s24, 1
      %p173 = por %p171, %p172
      %p174 = scmp.ne.s32.totalorder %s165, %s166
      %p175 = scmp.eq.s32.totalorder %s24, 0
      %p176 = por %p174, %p175
      %p177 = scmp.ne.s32.totalorder %s165, %s166
      %p178 = scmp.eq.s32.totalorder %s25, 1
      %p179 = por %p177, %p178
      %p181 = scmp.ne.s32.totalorder %s166, %s180
      %p182 = scmp.eq.s32.totalorder %s25, 0
      %p183 = por %p181, %p182
      %s185 = sadd.s32 %s184, 1
      %p188 = scmp.eq.s32.totalorder %s19, 1
      %p189 = scmp.ne.s32.totalorder %s184, %s186
      %p190 = scmp.eq.s32.totalorder %s19, 0
      %p191 = por %p189, %p190
      %p192 = scmp.ne.s32.totalorder %s184, %s186
      %p193 = scmp.eq.s32.totalorder %s24, 1
      %p194 = por %p192, %p193
      %p195 = scmp.ne.s32.totalorder %s186, %s187
      %p196 = scmp.eq.s32.totalorder %s24, 0
      %p197 = por %p195, %p196
      %p198 = scmp.ne.s32.totalorder %s186, %s187
      %p199 = scmp.eq.s32.totalorder %s25, 1
      %p200 = por %p198, %p199
      %p202 = scmp.ne.s32.totalorder %s187, %s201
      %p203 = scmp.eq.s32.totalorder %s25, 0
      %p204 = por %p202, %p203
      %s206 = sadd.s32 %s205, 1
      %p209 = scmp.eq.s32.totalorder %s19, 1
      %p210 = scmp.ne.s32.totalorder %s205, %s207
      %p211 = scmp.eq.s32.totalorder %s19, 0
      %p212 = por %p210, %p211
      %p213 = scmp.ne.s32.totalorder %s205, %s207
      %p214 = scmp.eq.s32.totalorder %s24, 1
      %p215 = por %p213, %p214
      %p216 = scmp.ne.s32.totalorder %s207, %s208
      %p217 = scmp.eq.s32.totalorder %s24, 0
      %p218 = por %p216, %p217
      %p219 = scmp.ne.s32.totalorder %s207, %s208
      %p220 = scmp.eq.s32.totalorder %s25, 1
      %p221 = por %p219, %p220
      %p223 = scmp.ne.s32.totalorder %s208, %s222
      %p224 = scmp.eq.s32.totalorder %s25, 0
      %p225 = por %p223, %p224
      %s227 = sadd.s32 %s226, 1
      %p230 = scmp.eq.s32.totalorder %s19, 1
      %p231 = scmp.ne.s32.totalorder %s226, %s228
      %p232 = scmp.eq.s32.totalorder %s19, 0
      %p233 = por %p231, %p232
      %p234 = scmp.ne.s32.totalorder %s226, %s228
      %p235 = scmp.eq.s32.totalorder %s24, 1
      %p236 = por %p234, %p235
      %p237 = scmp.ne.s32.totalorder %s228, %s229
      %p238 = scmp.eq.s32.totalorder %s24, 0
      %p239 = por %p237, %p238
      %p240 = scmp.ne.s32.totalorder %s228, %s229
      %p241 = scmp.eq.s32.totalorder %s25, 1
      %p242 = por %p240, %p241
      %p244 = scmp.ne.s32.totalorder %s229, %s243
      %p245 = scmp.eq.s32.totalorder %s25, 0
      %p246 = por %p244, %p245
      %s247 = ssub.s32 %s19, %s26
      %p248 = scmp.eq.s32.totalorder %s247, 0
      %s250 = sadd.s32 %s249, 1
      %s251 = scalar_select %p248, %s249, %s250
      %p254 = pneg %p248
      %p255 = scmp.eq.s32.totalorder %s19, 1
      %p256 = por %p254, %p255
      %p257 = scmp.ne.s32.totalorder %s249, %s252
      %p258 = scmp.eq.s32.totalorder %s19, 0
      %p259 = por %p257, %p258
      %p260 = scmp.ne.s32.totalorder %s249, %s252
      %p261 = scmp.eq.s32.totalorder %s24, 1
      %p262 = por %p260, %p261
      %p263 = scmp.ne.s32.totalorder %s252, %s253
      %p264 = scmp.eq.s32.totalorder %s24, 0
      %p265 = por %p263, %p264
      %p266 = scmp.ne.s32.totalorder %s252, %s253
      %p267 = scmp.eq.s32.totalorder %s25, 1
      %p268 = por %p266, %p267
      %p270 = scmp.ne.s32.totalorder %s253, %s269
      %p271 = scmp.eq.s32.totalorder %s25, 0
      %p272 = por %p270, %p271
      %p273 = scmp.le.s32.totalorder 1, %s19
      %p274 = scmp.lt.s32.totalorder %s19, 3
      %p275 = pnand %p273, %p274
      %p276 = pneg %p275
      // Predicated region
      $region9: #{tpu_custom_call.1} parent=5 // pred_check
        _
      $region10: #{tpu_custom_call.1} parent=5 // pred_check_branch
        %278 = sbr.rel (%p275) target = $region12
      $region11: #{tpu_custom_call.1} parent=5 // pred_region
        %s279 = ssub.s32 %s19, 1
        // Predicated region
        $region13: #{tpu_custom_call.1} parent=11 // pred_check
          %p280 = pneg %p92
        $region14: #{tpu_custom_call.1} parent=11 // pred_check_branch
          %282 = sbr.rel (%p280) target = $region16
        $region15: #{tpu_custom_call.1} parent=11 // pred_region
          _
        $region16: #{tpu_custom_call.1} parent=11 // pred_fallthru
          _
        // Predicated region
        $region17: #{tpu_custom_call.1} parent=11 // pred_check
          %p283 = pneg %p113
        $region18: #{tpu_custom_call.1} parent=11 // pred_check_branch
          %285 = sbr.rel (%p283) target = $region20
        $region19: #{tpu_custom_call.1} parent=11 // pred_region
          _
        $region20: #{tpu_custom_call.1} parent=11 // pred_fallthru
          _
        // Predicated region
        $region21: #{tpu_custom_call.1} parent=11 // pred_check
          %p286 = pneg %p134
        $region22: #{tpu_custom_call.1} parent=11 // pred_check_branch
          %288 = sbr.rel (%p286) target = $region24
        $region23: #{tpu_custom_call.1} parent=11 // pred_region
          _
        $region24: #{tpu_custom_call.1} parent=11 // pred_fallthru
          _
        // Predicated region
        $region25: #{tpu_custom_call.1} parent=11 // pred_check
          %p289 = pneg %p155
        $region26: #{tpu_custom_call.1} parent=11 // pred_check_branch
          %291 = sbr.rel (%p289) target = $region28
        $region27: #{tpu_custom_call.1} parent=11 // pred_region
          _
        $region28: #{tpu_custom_call.1} parent=11 // pred_fallthru
          _
        // Predicated region
        $region29: #{tpu_custom_call.1} parent=11 // pred_check
          %p292 = pneg %p176
        $region30: #{tpu_custom_call.1} parent=11 // pred_check_branch
          %294 = sbr.rel (%p292) target = $region32
        $region31: #{tpu_custom_call.1} parent=11 // pred_region
          _
        $region32: #{tpu_custom_call.1} parent=11 // pred_fallthru
          _
        // Predicated region
        $region33: #{tpu_custom_call.1} parent=11 // pred_check
          %p295 = pneg %p197
        $region34: #{tpu_custom_call.1} parent=11 // pred_check_branch
          %297 = sbr.rel (%p295) target = $region36
        $region35: #{tpu_custom_call.1} parent=11 // pred_region
          _
        $region36: #{tpu_custom_call.1} parent=11 // pred_fallthru
          _
        // Predicated region
        $region37: #{tpu_custom_call.1} parent=11 // pred_check
          %p298 = pneg %p218
        $region38: #{tpu_custom_call.1} parent=11 // pred_check_branch
          %300 = sbr.rel (%p298) target = $region40
        $region39: #{tpu_custom_call.1} parent=11 // pred_region
          _
        $region40: #{tpu_custom_call.1} parent=11 // pred_fallthru
          _
        // Predicated region
        $region41: #{tpu_custom_call.1} parent=11 // pred_check
          %p301 = pneg %p239
        $region42: #{tpu_custom_call.1} parent=11 // pred_check_branch
          %303 = sbr.rel (%p301) target = $region44
        $region43: #{tpu_custom_call.1} parent=11 // pred_region
          _
        $region44: #{tpu_custom_call.1} parent=11 // pred_fallthru
          _
      $region12: #{tpu_custom_call.1} parent=5 // pred_fallthru
        _
      %p304 = scmp.lt.s32.totalorder %s19, 2
      // Predicated region
      $region45: #{tpu_custom_call.1} parent=5 // pred_check
        %p305 = pneg %p304
      $region46: #{tpu_custom_call.1} parent=5 // pred_check_branch
        %307 = sbr.rel (%p305) target = $region48
      $region47: #{tpu_custom_call.1} parent=5 // pred_region
        // Predicated region
        $region49: #{tpu_custom_call.1} parent=47 // pred_check
          %p308 = pneg %p39
        $region50: #{tpu_custom_call.1} parent=47 // pred_check_branch
          %310 = sbr.rel (%p308) target = $region52
        $region51: #{tpu_custom_call.1} parent=47 // pred_region
          %s311 = smul.u32 2, %s19
          %p312 = scmp.lt.s32.totalorder %s311, 3
          %s313 = scalar_select %p312, %s311, 3
          %s314 = smul.addr %s313, 4
          %s315 = scalar_lea.vmem %s0, %s314
          %s316 = smul.u32 2, %s19
        $region52: #{tpu_custom_call.1} parent=47 // pred_fallthru
          _
        // Predicated region
        $region53: #{tpu_custom_call.1} parent=47 // pred_check
          %p317 = pneg %p65
        $region54: #{tpu_custom_call.1} parent=47 // pred_check_branch
          %319 = sbr.rel (%p317) target = $region56
        $region55: #{tpu_custom_call.1} parent=47 // pred_region
          %s320 = smul.u32 2, %s19
          %p321 = scmp.lt.s32.totalorder %s320, 3
          %s322 = scalar_select %p321, %s320, 3
          %s323 = smul.addr %s322, 2
          %s324 = smul.addr %s323, 4
          %s325 = scalar_lea.vmem %s1, %s324
          %s326 = smul.u32 2, %s19
        $region56: #{tpu_custom_call.1} parent=47 // pred_fallthru
          _
      $region48: #{tpu_custom_call.1} parent=5 // pred_fallthru
        _
      %p327 = scmp.le.s32.totalorder 1, %s19
      %p328 = scmp.lt.s32.totalorder %s19, 3
      %p329 = pnand %p327, %p328
      %p330 = pneg %p329
      // Predicated region
      $region57: #{tpu_custom_call.1} parent=5 // pred_check
        _
      $region58: #{tpu_custom_call.1} parent=5 // pred_check_branch
        %332 = sbr.rel (%p329) target = $region60
      $region59: #{tpu_custom_call.1} parent=5 // pred_region
        %s333 = ssub.s32 %s19, 1
        %s334 = smul.u32 2, %s24
        %p335 = scmp.lt.s32.totalorder %s334, 3
        %s336 = scalar_select %p335, %s334, 3
        %s337 = smul.addr %s336, 4
        %s338 = scalar_lea.vmem %s0, %s337
        %p339 = pneg %p45
        %p340 = pneg %p42
        %s341 = smul.u32 2, %s24
        %p342 = scmp.lt.s32.totalorder %s341, 3
        %s343 = scalar_select %p342, %s341, 3
        %s344 = smul.addr %s343, 2
        %s345 = smul.addr %s344, 4
        %s346 = scalar_lea.vmem %s1, %s345
        %p347 = pneg %p71
        %p348 = pneg %p68
        %p349 = pneg %p92
        %p350 = pneg %p89
        %p351 = pneg %p113
        %p352 = pneg %p110
        %p353 = pneg %p134
        %p354 = pneg %p131
        %p355 = pneg %p155
        %p356 = pneg %p152
        %p357 = pneg %p176
        %p358 = pneg %p173
        %p359 = pneg %p197
        %p360 = pneg %p194
        %p361 = pneg %p218
        %p362 = pneg %p215
        %p363 = pneg %p239
        %p364 = pneg %p236
        %p365 = pneg %p265
        %p366 = pneg %p262
        %s367 = sand.u32 %s252, 1
        %s368 = scalar_lea.sflag [#allocation3], %s367
        %s369 = sand.u32 %s252, 1
        %s370 = smul.addr %s369, 16
        %s371 = scalar_lea.vmem [#allocation2], %s370
        %s372 = smul.u32 2, %s24
        %p373 = scmp.lt.s32.totalorder %s372, 3
        %s374 = scalar_select %p373, %s372, 3
        %s375 = smul.addr %s374, 4
        %s376 = scalar_lea.vmem %s0, %s375
        %s377 = smul.u32 2, %s24
        %s378 = smul.u32 2, %s24
        %p379 = scmp.lt.s32.totalorder %s378, 3
        %s380 = scalar_select %p379, %s378, 3
        %s381 = smul.addr %s380, 2
        %s382 = smul.addr %s381, 4
        %s383 = scalar_lea.vmem %s1, %s382
        %s384 = smul.u32 2, %s24
        %s385 = smul.u32 2, %s24
        %v387 = vld [vmem:[%s376] sm:$0xf]
        %v388 = vld [vmem:[%s376 + $0x4] sm:$0xf]
        %v389 = vld [vmem:[%s383] sm:$0xf]
        %v390 = vld [vmem:[%s383 + $0x4] sm:$0xf]
        %v391 = vld [vmem:[%s383 + $0x8] sm:$0xf]
        %v392 = vld [vmem:[%s383 + $0xc] sm:$0xf]
        %v393 = vld [vmem:[%s9] sm:$0x1]
        %v394 = vld [vmem:[%s2] sm:$0xf]
        %v395 = vld [vmem:[%s2 + $0x4] sm:$0xf]
        %v396 = vld [vmem:[%s2 + $0x8] sm:$0xf]
        %v397 = vld [vmem:[%s2 + $0xc] sm:$0xf]
        %v398 = vld [vmem:[%s3] sm:$0x1]
        %v400 = vlaneseq
        %v401 = vshrl.u32 %v400, 7
        %v402 = vsub.s32 0, %v401
        %v403 = vrot.slane %v398, %v402
        %v407 = vunpack.c.l.b16 %v387
        %v408 = vunpack.c.l.b16 %v388
        %v409 = vpack.c.b16 %v408, %v407
        %v414 = vunpack.c.l.b16 %v394
        %v415 = vunpack.c.l.b16 %v395
        %v416 = vunpack.c.l.b16 %v396
        %v417 = vunpack.c.l.b16 %v397
        %v418 = vpack.c.b16 %v415, %v414
        %v419 = vpack.c.b16 %v417, %v416
        %vm422 = vcmask 261120
        %v424 = vsel %vm422, %v409, 0
        %426 = vmatprep.subr.bf16.mxu0 0
        %427 = vmatpush1.bf16.msra.mxu0 %v418
        %428 = vmatprep.subr.bf16.mxu0 0
        %429 = vmatpush1.bf16.msra.mxu0 %v419
        %430 = vmatprep.subr.bf16.mxu0 0
        %431 = vmatpush1.bf16.msra.mxu0 0
        %432 = vmatprep.subr.bf16.mxu0 0
        %433 = vmatpush1.bf16.msra.mxu0 0
        %434 = vmatprep.subr.bf16.mxu0 0
        %435 = vmatpush1.bf16.msra.mxu0 0
        %436 = vmatprep.subr.bf16.mxu0 0
        %437 = vmatpush1.bf16.msra.mxu0 0
        %438 = vmatprep.subr.bf16.mxu0 0
        %439 = vmatpush1.bf16.msra.mxu0 0
        %440 = vmatprep.subr.bf16.mxu0 0
        %441 = vmatpush1.bf16.msra.mxu0 0
        %442 = vmatprep.subr.bf16.mxu0 0
        %443 = vmatpush1.bf16.msra.mxu0 0
        %444 = vmatprep.subr.bf16.mxu0 0
        %445 = vmatpush1.bf16.msra.mxu0 0
        %446 = vmatprep.subr.bf16.mxu0 0
        %447 = vmatpush1.bf16.msra.mxu0 0
        %448 = vmatprep.subr.bf16.mxu0 0
        %449 = vmatpush1.bf16.msra.mxu0 0
        %450 = vmatprep.subr.bf16.mxu0 0
        %451 = vmatpush1.bf16.msra.mxu0 0
        %452 = vmatprep.subr.bf16.mxu0 0
        %453 = vmatpush1.bf16.msra.mxu0 0
        %454 = vmatprep.subr.bf16.mxu0 0
        %455 = vmatpush1.bf16.msra.mxu0 0
        %456 = vmatprep.subr.bf16.mxu0 0
        %457 = vmatpush1.bf16.msra.mxu0 0
        %458 = vmatprep.mubr.bf16.mxu0 0
        %459 = vmatmul.mubr.bf16.gmra.mrb[0].mxu0 %v424
        %v460 = vpop.f32.mrb[0].mxu0
        %v461 = vadd.f32 %v403, %v460
        %v462 = vpop.f32.mrb[0].mxu0
        %v463 = vpop.f32.mrb[0].mxu0
        %v464 = vadd.f32 %v403, %v463
        %v465 = vpop.f32.mrb[0].mxu0
        %466 = vdwg.mxu0
        %v467 = vld [vmem:[%s4] sm:$0xf]
        %v468 = vld [vmem:[%s4 + $0x4] sm:$0xf]
        %v469 = vld [vmem:[%s5] sm:$0x1]
        %v471 = vlaneseq
        %v472 = vshrl.u32 %v471, 7
        %v473 = vsub.s32 0, %v472
        %v474 = vrot.slane %v469, %v473
        %v480 = vunpack.c.l.b16 %v389
        %v481 = vunpack.c.l.b16 %v390
        %v482 = vunpack.c.l.b16 %v391
        %v483 = vunpack.c.l.b16 %v392
        %v484 = vpack.c.b16 %v481, %v480
        %v485 = vpack.c.b16 %v483, %v482
        %v488 = vunpack.c.l.b16 %v467
        %v489 = vunpack.c.l.b16 %v468
        %v490 = vpack.c.b16 %v489, %v488
        %vm492 = vcmask 130048
        %v494 = vsel %vm492, %v484, 0
        %v497 = vsel %vm492, %v485, 0
        %499 = vmatprep.subr.bf16.mxu0 0
        %500 = vmatpush1.bf16.msra.mxu0 %v490
        %501 = vmatprep.subr.bf16.mxu0 0
        %502 = vmatpush1.bf16.msra.mxu0 0
        %503 = vmatprep.subr.bf16.mxu0 0
        %504 = vmatpush1.bf16.msra.mxu0 0
        %505 = vmatprep.subr.bf16.mxu0 0
        %506 = vmatpush1.bf16.msra.mxu0 0
        %507 = vmatprep.subr.bf16.mxu0 0
        %508 = vmatpush1.bf16.msra.mxu0 0
        %509 = vmatprep.subr.bf16.mxu0 0
        %510 = vmatpush1.bf16.msra.mxu0 0
        %511 = vmatprep.subr.bf16.mxu0 0
        %512 = vmatpush1.bf16.msra.mxu0 0
        %513 = vmatprep.subr.bf16.mxu0 0
        %514 = vmatpush1.bf16.msra.mxu0 0
        %515 = vmatprep.subr.bf16.mxu0 0
        %516 = vmatpush1.bf16.msra.mxu0 0
        %517 = vmatprep.subr.bf16.mxu0 0
        %518 = vmatpush1.bf16.msra.mxu0 0
        %519 = vmatprep.subr.bf16.mxu0 0
        %520 = vmatpush1.bf16.msra.mxu0 0
        %521 = vmatprep.subr.bf16.mxu0 0
        %522 = vmatpush1.bf16.msra.mxu0 0
        %523 = vmatprep.subr.bf16.mxu0 0
        %524 = vmatpush1.bf16.msra.mxu0 0
        %525 = vmatprep.subr.bf16.mxu0 0
        %526 = vmatpush1.bf16.msra.mxu0 0
        %527 = vmatprep.subr.bf16.mxu0 0
        %528 = vmatpush1.bf16.msra.mxu0 0
        %529 = vmatprep.subr.bf16.mxu0 0
        %530 = vmatpush1.bf16.msra.mxu0 0
        %531 = vmatprep.mubr.bf16.mxu0 0
        %532 = vmatmul.mubr.bf16.gmra.mrb[0].mxu0 %v494
        %v533 = vpop.f32.mrb[0].mxu0
        %v534 = vadd.f32 %v474, %v533
        %v535 = vpop.f32.mrb[0].mxu0
        %v536 = vpop.f32.mrb[0].mxu0
        %v537 = vadd.f32 %v474, %v536
        %v538 = vpop.f32.mrb[0].mxu0
        %539 = vmatprep.mubr.bf16.mxu0 0
        %540 = vmatmul.mubr.bf16.gmra.mrb[0].mxu0 %v497
        %v541 = vpop.f32.mrb[0].mxu0
        %v542 = vadd.f32 %v474, %v541
        %v543 = vpop.f32.mrb[0].mxu0
        %v544 = vpop.f32.mrb[0].mxu0
        %v545 = vadd.f32 %v474, %v544
        %v546 = vpop.f32.mrb[0].mxu0
        %547 = vdwg.mxu0
        %v548 = vld [vmem:[%s6] sm:$0xf]
        %v549 = vld [vmem:[%s6 + $0x4] sm:$0xf]
        %v550 = vld [vmem:[%s7] sm:$0x1]
        %v552 = vlaneseq
        %v553 = vshrl.u32 %v552, 7
        %v554 = vsub.s32 0, %v553
        %v555 = vrot.slane %v550, %v554
        %v559 = vunpack.c.l.b16 %v548
        %v560 = vunpack.c.l.b16 %v549
        %v561 = vpack.c.b16 %v560, %v559
        %563 = vmatprep.subr.bf16.mxu0 0
        %564 = vmatpush1.bf16.msra.mxu0 %v561
        %565 = vmatprep.subr.bf16.mxu0 0
        %566 = vmatpush1.bf16.msra.mxu0 0
        %567 = vmatprep.subr.bf16.mxu0 0
        %568 = vmatpush1.bf16.msra.mxu0 0
        %569 = vmatprep.subr.bf16.mxu0 0
        %570 = vmatpush1.bf16.msra.mxu0 0
        %571 = vmatprep.subr.bf16.mxu0 0
        %572 = vmatpush1.bf16.msra.mxu0 0
        %573 = vmatprep.subr.bf16.mxu0 0
        %574 = vmatpush1.bf16.msra.mxu0 0
        %575 = vmatprep.subr.bf16.mxu0 0
        %576 = vmatpush1.bf16.msra.mxu0 0
        %577 = vmatprep.subr.bf16.mxu0 0
        %578 = vmatpush1.bf16.msra.mxu0 0
        %579 = vmatprep.subr.bf16.mxu0 0
        %580 = vmatpush1.bf16.msra.mxu0 0
        %581 = vmatprep.subr.bf16.mxu0 0
        %582 = vmatpush1.bf16.msra.mxu0 0
        %583 = vmatprep.subr.bf16.mxu0 0
        %584 = vmatpush1.bf16.msra.mxu0 0
        %585 = vmatprep.subr.bf16.mxu0 0
        %586 = vmatpush1.bf16.msra.mxu0 0
        %587 = vmatprep.subr.bf16.mxu0 0
        %588 = vmatpush1.bf16.msra.mxu0 0
        %589 = vmatprep.subr.bf16.mxu0 0
        %590 = vmatpush1.bf16.msra.mxu0 0
        %591 = vmatprep.subr.bf16.mxu0 0
        %592 = vmatpush1.bf16.msra.mxu0 0
        %593 = vmatprep.subr.bf16.mxu0 0
        %594 = vmatpush1.bf16.msra.mxu0 0
        %595 = vmatprep.mubr.bf16.mxu0 0
        %596 = vmatmul.mubr.bf16.gmra.mrb[0].mxu0 %v494
        %v597 = vpop.f32.mrb[0].mxu0
        %v598 = vadd.f32 %v555, %v597
        %v599 = vpop.f32.mrb[0].mxu0
        %v600 = vpop.f32.mrb[0].mxu0
        %v601 = vadd.f32 %v555, %v600
        %v602 = vpop.f32.mrb[0].mxu0
        %603 = vmatprep.mubr.bf16.mxu0 0
        %604 = vmatmul.mubr.bf16.gmra.mrb[0].mxu0 %v497
        %v605 = vpop.f32.mrb[0].mxu0
        %v606 = vadd.f32 %v555, %v605
        %v607 = vpop.f32.mrb[0].mxu0
        %v608 = vpop.f32.mrb[0].mxu0
        %v609 = vadd.f32 %v555, %v608
        %v610 = vpop.f32.mrb[0].mxu0
        %611 = vdwg.mxu0
        %v612 = vpack.c.bf16 %v461, %v461
        %v613 = vpack.c.bf16 %v464, %v464
        %v614 = vpack.c.bf16 %v537, %v534
        %v615 = vpack.c.bf16 %v545, %v542
        %vm616 = vcmask 64512
        %v618 = vsel %vm616, %v612, 0
        %v621 = vsel %vm616, %v614, 0
        %623 = vmatprep.subr.bf16.mxu0 0
        %624 = vmatpush1.bf16.xpose.msra.mxu0 %v621
        %625 = vmatprep.subr.bf16.mxu0 0
        %626 = vmatpush1.bf16.xpose.msra.mxu0 0
        %627 = vmatprep.subr.bf16.mxu0 0
        %628 = vmatpush1.bf16.xpose.msra.mxu0 0
        %629 = vmatprep.subr.bf16.mxu0 0
        %630 = vmatpush1.bf16.xpose.msra.mxu0 0
        %631 = vmatprep.subr.bf16.mxu0 0
        %632 = vmatpush1.bf16.xpose.msra.mxu0 0
        %633 = vmatprep.subr.bf16.mxu0 0
        %634 = vmatpush1.bf16.xpose.msra.mxu0 0
        %635 = vmatprep.subr.bf16.mxu0 0
        %636 = vmatpush1.bf16.xpose.msra.mxu0 0
        %637 = vmatprep.subr.bf16.mxu0 0
        %638 = vmatpush1.bf16.xpose.msra.mxu0 0
        %639 = vmatprep.subr.bf16.mxu0 0
        %640 = vmatpush1.bf16.xpose.msra.mxu0 0
        %641 = vmatprep.subr.bf16.mxu0 0
        %642 = vmatpush1.bf16.xpose.msra.mxu0 0
        %643 = vmatprep.subr.bf16.mxu0 0
        %644 = vmatpush1.bf16.xpose.msra.mxu0 0
        %645 = vmatprep.subr.bf16.mxu0 0
        %646 = vmatpush1.bf16.xpose.msra.mxu0 0
        %647 = vmatprep.subr.bf16.mxu0 0
        %648 = vmatpush1.bf16.xpose.msra.mxu0 0
        %649 = vmatprep.subr.bf16.mxu0 0
        %650 = vmatpush1.bf16.xpose.msra.mxu0 0
        %651 = vmatprep.subr.bf16.mxu0 0
        %652 = vmatpush1.bf16.xpose.msra.mxu0 0
        %653 = vmatprep.subr.bf16.mxu0 0
        %654 = vmatpush1.bf16.xpose.msra.mxu0 0
        %655 = vmatprep.mubr.bf16.mxu0 0
        %656 = vmatmul.mubr.bf16.gmra.mrb[0].mxu0 %v618
        %v657 = vpop.f32.mrb[0].mxu0
        %v658 = vadd.f32 0.0, %v657
        %v659 = vpop.f32.mrb[0].mxu0
        %v660 = vpop.f32.mrb[0].mxu0
        %v661 = vpop.f32.mrb[0].mxu0
        %662 = vdwg.mxu0
        %v664 = vsel %vm616, %v613, 0
        %v667 = vsel %vm616, %v615, 0
        %669 = vmatprep.subr.bf16.mxu0 0
        %670 = vmatpush1.bf16.xpose.msra.mxu0 %v667
        %671 = vmatprep.subr.bf16.mxu0 0
        %672 = vmatpush1.bf16.xpose.msra.mxu0 0
        %673 = vmatprep.subr.bf16.mxu0 0
        %674 = vmatpush1.bf16.xpose.msra.mxu0 0
        %675 = vmatprep.subr.bf16.mxu0 0
        %676 = vmatpush1.bf16.xpose.msra.mxu0 0
        %677 = vmatprep.subr.bf16.mxu0 0
        %678 = vmatpush1.bf16.xpose.msra.mxu0 0
        %679 = vmatprep.subr.bf16.mxu0 0
        %680 = vmatpush1.bf16.xpose.msra.mxu0 0
        %681 = vmatprep.subr.bf16.mxu0 0
        %682 = vmatpush1.bf16.xpose.msra.mxu0 0
        %683 = vmatprep.subr.bf16.mxu0 0
        %684 = vmatpush1.bf16.xpose.msra.mxu0 0
        %685 = vmatprep.subr.bf16.mxu0 0
        %686 = vmatpush1.bf16.xpose.msra.mxu0 0
        %687 = vmatprep.subr.bf16.mxu0 0
        %688 = vmatpush1.bf16.xpose.msra.mxu0 0
        %689 = vmatprep.subr.bf16.mxu0 0
        %690 = vmatpush1.bf16.xpose.msra.mxu0 0
        %691 = vmatprep.subr.bf16.mxu0 0
        %692 = vmatpush1.bf16.xpose.msra.mxu0 0
        %693 = vmatprep.subr.bf16.mxu0 0
        %694 = vmatpush1.bf16.xpose.msra.mxu0 0
        %695 = vmatprep.subr.bf16.mxu0 0
        %696 = vmatpush1.bf16.xpose.msra.mxu0 0
        %697 = vmatprep.subr.bf16.mxu0 0
        %698 = vmatpush1.bf16.xpose.msra.mxu0 0
        %699 = vmatprep.subr.bf16.mxu0 0
        %700 = vmatpush1.bf16.xpose.msra.mxu0 0
        %701 = vmatprep.mubr.bf16.mxu0 0
        %702 = vmatmul.mubr.bf16.gmra.mrb[0].mxu0 %v664
        %v703 = vpop.f32.mrb[0].mxu0
        %v704 = vadd.f32 0.0, %v703
        %v705 = vpop.f32.mrb[0].mxu0
        %v706 = vpop.f32.mrb[0].mxu0
        %v707 = vpop.f32.mrb[0].mxu0
        %708 = vdwg.mxu0
        %v709 = vmul.f32 %v658, 0.17677669
        %v710 = vmul.f32 %v704, 0.17677669
        %v711 = vsel %vm492, %v709, -inf
        %712 = vmax.xlane.f32.xlu0 %v711
        %v713 = vpop.xlane.xlu0 %712
        %v714 = vsel %vm492, %v710, -inf
        %715 = vmax.xlane.f32.xlu0 %v714
        %v716 = vpop.xlane.xlu0 %715
        %v717 = vsub.f32 %v709, %v713
        %v718 = vsub.f32 %v710, %v716
        %v719 = vmul.f32 %v717, 1.442695
        %v720 = vpow.pop %v719
        %v721 = vmul.f32 %v718, 1.442695
        %v722 = vpow.pop %v721
        %v723 = vsel %vm492, %v720, 0.0
        %724 = vadd.xlane.f32.xlu0 %v723
        %v725 = vpop.xlane.xlu0 %724
        %v726 = vsel %vm492, %v722, 0.0
        %727 = vadd.xlane.f32.xlu0 %v726
        %v728 = vpop.xlane.xlu0 %727
        %v729 = vrcp.pop %v725
        %v730 = vrcp.pop %v728
        %v731 = vmul.f32 %v720, %v729
        %v732 = vmul.f32 %v722, %v730
        %v733 = vpack.c.bf16 %v731, %v731
        %v734 = vpack.c.bf16 %v732, %v732
        %v735 = vpack.c.bf16 %v601, %v598
        %v736 = vpack.c.bf16 %v609, %v606
        %v738 = vsel %vm492, %v733, 0
        %740 = vmatprep.subr.bf16.mxu0 0
        %741 = vmatpush1.bf16.msra.mxu0 %v735
        %742 = vmatprep.subr.bf16.mxu0 0
        %743 = vmatpush1.bf16.msra.mxu0 0
        %744 = vmatprep.subr.bf16.mxu0 0
        %745 = vmatpush1.bf16.msra.mxu0 0
        %746 = vmatprep.subr.bf16.mxu0 0
        %747 = vmatpush1.bf16.msra.mxu0 0
        %748 = vmatprep.subr.bf16.mxu0 0
        %749 = vmatpush1.bf16.msra.mxu0 0
        %750 = vmatprep.subr.bf16.mxu0 0
        %751 = vmatpush1.bf16.msra.mxu0 0
        %752 = vmatprep.subr.bf16.mxu0 0
        %753 = vmatpush1.bf16.msra.mxu0 0
        %754 = vmatprep.subr.bf16.mxu0 0
        %755 = vmatpush1.bf16.msra.mxu0 0
        %756 = vmatprep.subr.bf16.mxu0 0
        %757 = vmatpush1.bf16.msra.mxu0 0
        %758 = vmatprep.subr.bf16.mxu0 0
        %759 = vmatpush1.bf16.msra.mxu0 0
        %760 = vmatprep.subr.bf16.mxu0 0
        %761 = vmatpush1.bf16.msra.mxu0 0
        %762 = vmatprep.subr.bf16.mxu0 0
        %763 = vmatpush1.bf16.msra.mxu0 0
        %764 = vmatprep.subr.bf16.mxu0 0
        %765 = vmatpush1.bf16.msra.mxu0 0
        %766 = vmatprep.subr.bf16.mxu0 0
        %767 = vmatpush1.bf16.msra.mxu0 0
        %768 = vmatprep.subr.bf16.mxu0 0
        %769 = vmatpush1.bf16.msra.mxu0 0
        %770 = vmatprep.subr.bf16.mxu0 0
        %771 = vmatpush1.bf16.msra.mxu0 0
        %772 = vmatprep.mubr.bf16.mxu0 0
        %773 = vmatmul.mubr.bf16.gmra.mrb[0].mxu0 %v738
        %v774 = vpop.f32.mrb[0].mxu0
        %v775 = vadd.f32 0.0, %v774
        %v776 = vpop.f32.mrb[0].mxu0
        %v777 = vpop.f32.mrb[0].mxu0
        %v778 = vpop.f32.mrb[0].mxu0
        %779 = vdwg.mxu0
        %v781 = vsel %vm492, %v734, 0
        %783 = vmatprep.subr.bf16.mxu0 0
        %784 = vmatpush1.bf16.msra.mxu0 %v736
        %785 = vmatprep.subr.bf16.mxu0 0
        %786 = vmatpush1.bf16.msra.mxu0 0
        %787 = vmatprep.subr.bf16.mxu0 0
        %788 = vmatpush1.bf16.msra.mxu0 0
        %789 = vmatprep.subr.bf16.mxu0 0
        %790 = vmatpush1.bf16.msra.mxu0 0
        %791 = vmatprep.subr.bf16.mxu0 0
        %792 = vmatpush1.bf16.msra.mxu0 0
        %793 = vmatprep.subr.bf16.mxu0 0
        %794 = vmatpush1.bf16.msra.mxu0 0
        %795 = vmatprep.subr.bf16.mxu0 0
        %796 = vmatpush1.bf16.msra.mxu0 0
        %797 = vmatprep.subr.bf16.mxu0 0
        %798 = vmatpush1.bf16.msra.mxu0 0
        %799 = vmatprep.subr.bf16.mxu0 0
        %800 = vmatpush1.bf16.msra.mxu0 0
        %801 = vmatprep.subr.bf16.mxu0 0
        %802 = vmatpush1.bf16.msra.mxu0 0
        %803 = vmatprep.subr.bf16.mxu0 0
        %804 = vmatpush1.bf16.msra.mxu0 0
        %805 = vmatprep.subr.bf16.mxu0 0
        %806 = vmatpush1.bf16.msra.mxu0 0
        %807 = vmatprep.subr.bf16.mxu0 0
        %808 = vmatpush1.bf16.msra.mxu0 0
        %809 = vmatprep.subr.bf16.mxu0 0
        %810 = vmatpush1.bf16.msra.mxu0 0
        %811 = vmatprep.subr.bf16.mxu0 0
        %812 = vmatpush1.bf16.msra.mxu0 0
        %813 = vmatprep.subr.bf16.mxu0 0
        %814 = vmatpush1.bf16.msra.mxu0 0
        %815 = vmatprep.mubr.bf16.mxu0 0
        %816 = vmatmul.mubr.bf16.gmra.mrb[0].mxu0 %v781
        %v817 = vpop.f32.mrb[0].mxu0
        %v818 = vadd.f32 0.0, %v817
        %v819 = vpop.f32.mrb[0].mxu0
        %v820 = vpop.f32.mrb[0].mxu0
        %v821 = vpop.f32.mrb[0].mxu0
        %822 = vdwg.mxu0
        %v823 = vadd.f32 %v461, %v775
        %v824 = vadd.f32 %v464, %v818
        %v825 = vpack.c.bf16 %v824, %v823
        %v826 = vld [vmem:[%s8] sm:$0xf]
        %v828 = vsel %vm616, %v825, 0
        %vm830 = vcmask 1043456
        %v832 = vsel %vm830, %v826, 0
        %834 = vmatprep.subr.bf16.mxu0 0
        %835 = vmatpush1.bf16.msra.mxu0 %v832
        %836 = vmatprep.subr.bf16.mxu0 0
        %837 = vmatpush1.bf16.msra.mxu0 0
        %838 = vmatprep.subr.bf16.mxu0 0
        %839 = vmatpush1.bf16.msra.mxu0 0
        %840 = vmatprep.subr.bf16.mxu0 0
        %841 = vmatpush1.bf16.msra.mxu0 0
        %842 = vmatprep.subr.bf16.mxu0 0
        %843 = vmatpush1.bf16.msra.mxu0 0
        %844 = vmatprep.subr.bf16.mxu0 0
        %845 = vmatpush1.bf16.msra.mxu0 0
        %846 = vmatprep.subr.bf16.mxu0 0
        %847 = vmatpush1.bf16.msra.mxu0 0
        %848 = vmatprep.subr.bf16.mxu0 0
        %849 = vmatpush1.bf16.msra.mxu0 0
        %850 = vmatprep.subr.bf16.mxu0 0
        %851 = vmatpush1.bf16.msra.mxu0 0
        %852 = vmatprep.subr.bf16.mxu0 0
        %853 = vmatpush1.bf16.msra.mxu0 0
        %854 = vmatprep.subr.bf16.mxu0 0
        %855 = vmatpush1.bf16.msra.mxu0 0
        %856 = vmatprep.subr.bf16.mxu0 0
        %857 = vmatpush1.bf16.msra.mxu0 0
        %858 = vmatprep.subr.bf16.mxu0 0
        %859 = vmatpush1.bf16.msra.mxu0 0
        %860 = vmatprep.subr.bf16.mxu0 0
        %861 = vmatpush1.bf16.msra.mxu0 0
        %862 = vmatprep.subr.bf16.mxu0 0
        %863 = vmatpush1.bf16.msra.mxu0 0
        %864 = vmatprep.subr.bf16.mxu0 0
        %865 = vmatpush1.bf16.msra.mxu0 0
        %866 = vmatprep.mubr.bf16.mxu0 0
        %867 = vmatmul.mubr.bf16.gmra.mrb[0].mxu0 %v828
        %v868 = vpop.f32.mrb[0].mxu0
        %v869 = vadd.f32 0.0, %v868
        %v870 = vpop.f32.mrb[0].mxu0
        %v871 = vpop.f32.mrb[0].mxu0
        %v872 = vadd.f32 0.0, %v871
        %v873 = vpop.f32.mrb[0].mxu0
        %874 = vdwg.mxu0
        %v876 = vlaneseq
        %v877 = vshrl.u32 %v876, 7
        %v878 = vsub.s32 0, %v877
        %v879 = vrot.slane %v393, %v878
        %v881 = vadd.f32 %v879, %v869
        %v882 = vadd.f32 %v879, %v872
        %s883 = scalar_lea.vmem %s2, 16
        %v884 = vld [vmem:[%s883] sm:$0xf]
        %v885 = vld [vmem:[%s883 + $0x4] sm:$0xf]
        %v886 = vld [vmem:[%s883 + $0x8] sm:$0xf]
        %v887 = vld [vmem:[%s883 + $0xc] sm:$0xf]
        %s888 = scalar_lea.vmem %s3, 1
        %v889 = vld [vmem:[%s888] sm:$0x1]
        %v891 = vlaneseq
        %v892 = vshrl.u32 %v891, 7
        %v893 = vsub.s32 0, %v892
        %v894 = vrot.slane %v889, %v893
        %v900 = vunpack.c.l.b16 %v884
        %v901 = vunpack.c.l.b16 %v885
        %v902 = vunpack.c.l.b16 %v886
        %v903 = vunpack.c.l.b16 %v887
        %v904 = vpack.c.b16 %v901, %v900
        %v905 = vpack.c.b16 %v903, %v902
        %908 = vmatprep.subr.bf16.mxu0 0
        %909 = vmatpush1.bf16.msra.mxu0 %v904
        %910 = vmatprep.subr.bf16.mxu0 0
        %911 = vmatpush1.bf16.msra.mxu0 %v905
        %912 = vmatprep.subr.bf16.mxu0 0
        %913 = vmatpush1.bf16.msra.mxu0 0
        %914 = vmatprep.subr.bf16.mxu0 0
        %915 = vmatpush1.bf16.msra.mxu0 0
        %916 = vmatprep.subr.bf16.mxu0 0
        %917 = vmatpush1.bf16.msra.mxu0 0
        %918 = vmatprep.subr.bf16.mxu0 0
        %919 = vmatpush1.bf16.msra.mxu0 0
        %920 = vmatprep.subr.bf16.mxu0 0
        %921 = vmatpush1.bf16.msra.mxu0 0
        %922 = vmatprep.subr.bf16.mxu0 0
        %923 = vmatpush1.bf16.msra.mxu0 0
        %924 = vmatprep.subr.bf16.mxu0 0
        %925 = vmatpush1.bf16.msra.mxu0 0
        %926 = vmatprep.subr.bf16.mxu0 0
        %927 = vmatpush1.bf16.msra.mxu0 0
        %928 = vmatprep.subr.bf16.mxu0 0
        %929 = vmatpush1.bf16.msra.mxu0 0
        %930 = vmatprep.subr.bf16.mxu0 0
        %931 = vmatpush1.bf16.msra.mxu0 0
        %932 = vmatprep.subr.bf16.mxu0 0
        %933 = vmatpush1.bf16.msra.mxu0 0
        %934 = vmatprep.subr.bf16.mxu0 0
        %935 = vmatpush1.bf16.msra.mxu0 0
        %936 = vmatprep.subr.bf16.mxu0 0
        %937 = vmatpush1.bf16.msra.mxu0 0
        %938 = vmatprep.subr.bf16.mxu0 0
        %939 = vmatpush1.bf16.msra.mxu0 0
        %940 = vmatprep.mubr.bf16.mxu0 0
        %941 = vmatmul.mubr.bf16.gmra.mrb[0].mxu0 %v424
        %v942 = vpop.f32.mrb[0].mxu0
        %v943 = vadd.f32 %v894, %v942
        %v944 = vpop.f32.mrb[0].mxu0
        %v945 = vpop.f32.mrb[0].mxu0
        %v946 = vadd.f32 %v894, %v945
        %v947 = vpop.f32.mrb[0].mxu0
        %948 = vdwg.mxu0
        %s949 = scalar_lea.vmem %s4, 8
        %v950 = vld [vmem:[%s949] sm:$0xf]
        %v951 = vld [vmem:[%s949 + $0x4] sm:$0xf]
        %s952 = scalar_lea.vmem %s5, 1
        %v953 = vld [vmem:[%s952] sm:$0x1]
        %v955 = vlaneseq
        %v956 = vshrl.u32 %v955, 7
        %v957 = vsub.s32 0, %v956
        %v958 = vrot.slane %v953, %v957
        %v962 = vunpack.c.l.b16 %v950
        %v963 = vunpack.c.l.b16 %v951
        %v964 = vpack.c.b16 %v963, %v962
        %966 = vmatprep.subr.bf16.mxu0 0
        %967 = vmatpush1.bf16.msra.mxu0 %v964
        %968 = vmatprep.subr.bf16.mxu0 0
        %969 = vmatpush1.bf16.msra.mxu0 0
        %970 = vmatprep.subr.bf16.mxu0 0
        %971 = vmatpush1.bf16.msra.mxu0 0
        %972 = vmatprep.subr.bf16.mxu0 0
        %973 = vmatpush1.bf16.msra.mxu0 0
        %974 = vmatprep.subr.bf16.mxu0 0
        %975 = vmatpush1.bf16.msra.mxu0 0
        %976 = vmatprep.subr.bf16.mxu0 0
        %977 = vmatpush1.bf16.msra.mxu0 0
        %978 = vmatprep.subr.bf16.mxu0 0
        %979 = vmatpush1.bf16.msra.mxu0 0
        %980 = vmatprep.subr.bf16.mxu0 0
        %981 = vmatpush1.bf16.msra.mxu0 0
        %982 = vmatprep.subr.bf16.mxu0 0
        %983 = vmatpush1.bf16.msra.mxu0 0
        %984 = vmatprep.subr.bf16.mxu0 0
        %985 = vmatpush1.bf16.msra.mxu0 0
        %986 = vmatprep.subr.bf16.mxu0 0
        %987 = vmatpush1.bf16.msra.mxu0 0
        %988 = vmatprep.subr.bf16.mxu0 0
        %989 = vmatpush1.bf16.msra.mxu0 0
        %990 = vmatprep.subr.bf16.mxu0 0
        %991 = vmatpush1.bf16.msra.mxu0 0
        %992 = vmatprep.subr.bf16.mxu0 0
        %993 = vmatpush1.bf16.msra.mxu0 0
        %994 = vmatprep.subr.bf16.mxu0 0
        %995 = vmatpush1.bf16.msra.mxu0 0
        %996 = vmatprep.subr.bf16.mxu0 0
        %997 = vmatpush1.bf16.msra.mxu0 0
        %998 = vmatprep.mubr.bf16.mxu0 0
        %999 = vmatmul.mubr.bf16.gmra.mrb[0].mxu0 %v494
        %v1000 = vpop.f32.mrb[0].mxu0
        %v1001 = vadd.f32 %v958, %v1000
        %v1002 = vpop.f32.mrb[0].mxu0
        %v1003 = vpop.f32.mrb[0].mxu0
        %v1004 = vadd.f32 %v958, %v1003
        %v1005 = vpop.f32.mrb[0].mxu0
        %1006 = vmatprep.mubr.bf16.mxu0 0
        %1007 = vmatmul.mubr.bf16.gmra.mrb[0].mxu0 %v497
        %v1008 = vpop.f32.mrb[0].mxu0
        %v1009 = vadd.f32 %v958, %v1008
        %v1010 = vpop.f32.mrb[0].mxu0
        %v1011 = vpop.f32.mrb[0].mxu0
        %v1012 = vadd.f32 %v958, %v1011
        %v1013 = vpop.f32.mrb[0].mxu0
        %1014 = vdwg.mxu0
        %s1015 = scalar_lea.vmem %s6, 8
        %v1016 = vld [vmem:[%s1015] sm:$0xf]
        %v1017 = vld [vmem:[%s1015 + $0x4] sm:$0xf]
        %s1018 = scalar_lea.vmem %s7, 1
        %v1019 = vld [vmem:[%s1018] sm:$0x1]
        %v1021 = vlaneseq
        %v1022 = vshrl.u32 %v1021, 7
        %v1023 = vsub.s32 0, %v1022
        %v1024 = vrot.slane %v1019, %v1023
        %v1028 = vunpack.c.l.b16 %v1016
        %v1029 = vunpack.c.l.b16 %v1017
        %v1030 = vpack.c.b16 %v1029, %v1028
        %1032 = vmatprep.subr.bf16.mxu0 0
        %1033 = vmatpush1.bf16.msra.mxu0 %v1030
        %1034 = vmatprep.subr.bf16.mxu0 0
        %1035 = vmatpush1.bf16.msra.mxu0 0
        %1036 = vmatprep.subr.bf16.mxu0 0
        %1037 = vmatpush1.bf16.msra.mxu0 0
        %1038 = vmatprep.subr.bf16.mxu0 0
        %1039 = vmatpush1.bf16.msra.mxu0 0
        %1040 = vmatprep.subr.bf16.mxu0 0
        %1041 = vmatpush1.bf16.msra.mxu0 0
        %1042 = vmatprep.subr.bf16.mxu0 0
        %1043 = vmatpush1.bf16.msra.mxu0 0
        %1044 = vmatprep.subr.bf16.mxu0 0
        %1045 = vmatpush1.bf16.msra.mxu0 0
        %1046 = vmatprep.subr.bf16.mxu0 0
        %1047 = vmatpush1.bf16.msra.mxu0 0
        %1048 = vmatprep.subr.bf16.mxu0 0
        %1049 = vmatpush1.bf16.msra.mxu0 0
        %1050 = vmatprep.subr.bf16.mxu0 0
        %1051 = vmatpush1.bf16.msra.mxu0 0
        %1052 = vmatprep.subr.bf16.mxu0 0
        %1053 = vmatpush1.bf16.msra.mxu0 0
        %1054 = vmatprep.subr.bf16.mxu0 0
        %1055 = vmatpush1.bf16.msra.mxu0 0
        %1056 = vmatprep.subr.bf16.mxu0 0
        %1057 = vmatpush1.bf16.msra.mxu0 0
        %1058 = vmatprep.subr.bf16.mxu0 0
        %1059 = vmatpush1.bf16.msra.mxu0 0
        %1060 = vmatprep.subr.bf16.mxu0 0
        %1061 = vmatpush1.bf16.msra.mxu0 0
        %1062 = vmatprep.subr.bf16.mxu0 0
        %1063 = vmatpush1.bf16.msra.mxu0 0
        %1064 = vmatprep.mubr.bf16.mxu0 0
        %1065 = vmatmul.mubr.bf16.gmra.mrb[0].mxu0 %v494
        %v1066 = vpop.f32.mrb[0].mxu0
        %v1067 = vadd.f32 %v1024, %v1066
        %v1068 = vpop.f32.mrb[0].mxu0
        %v1069 = vpop.f32.mrb[0].mxu0
        %v1070 = vadd.f32 %v1024, %v1069
        %v1071 = vpop.f32.mrb[0].mxu0
        %1072 = vmatprep.mubr.bf16.mxu0 0
        %1073 = vmatmul.mubr.bf16.gmra.mrb[0].mxu0 %v497
        %v1074 = vpop.f32.mrb[0].mxu0
        %v1075 = vadd.f32 %v1024, %v1074
        %v1076 = vpop.f32.mrb[0].mxu0
        %v1077 = vpop.f32.mrb[0].mxu0
        %v1078 = vadd.f32 %v1024, %v1077
        %v1079 = vpop.f32.mrb[0].mxu0
        %1080 = vdwg.mxu0
        %v1081 = vpack.c.bf16 %v943, %v943
        %v1082 = vpack.c.bf16 %v946, %v946
        %v1083 = vpack.c.bf16 %v1004, %v1001
        %v1084 = vpack.c.bf16 %v1012, %v1009
        %v1086 = vsel %vm616, %v1081, 0
        %v1089 = vsel %vm616, %v1083, 0
        %1091 = vmatprep.subr.bf16.mxu0 0
        %1092 = vmatpush1.bf16.xpose.msra.mxu0 %v1089
        %1093 = vmatprep.subr.bf16.mxu0 0
        %1094 = vmatpush1.bf16.xpose.msra.mxu0 0
        %1095 = vmatprep.subr.bf16.mxu0 0
        %1096 = vmatpush1.bf16.xpose.msra.mxu0 0
        %1097 = vmatprep.subr.bf16.mxu0 0
        %1098 = vmatpush1.bf16.xpose.msra.mxu0 0
        %1099 = vmatprep.subr.bf16.mxu0 0
        %1100 = vmatpush1.bf16.xpose.msra.mxu0 0
        %1101 = vmatprep.subr.bf16.mxu0 0
        %1102 = vmatpush1.bf16.xpose.msra.mxu0 0
        %1103 = vmatprep.subr.bf16.mxu0 0
        %1104 = vmatpush1.bf16.xpose.msra.mxu0 0
        %1105 = vmatprep.subr.bf16.mxu0 0
        %1106 = vmatpush1.bf16.xpose.msra.mxu0 0
        %1107 = vmatprep.subr.bf16.mxu0 0
        %1108 = vmatpush1.bf16.xpose.msra.mxu0 0
        %1109 = vmatprep.subr.bf16.mxu0 0
        %1110 = vmatpush1.bf16.xpose.msra.mxu0 0
        %1111 = vmatprep.subr.bf16.mxu0 0
        %1112 = vmatpush1.bf16.xpose.msra.mxu0 0
        %1113 = vmatprep.subr.bf16.mxu0 0
        %1114 = vmatpush1.bf16.xpose.msra.mxu0 0
        %1115 = vmatprep.subr.bf16.mxu0 0
        %1116 = vmatpush1.bf16.xpose.msra.mxu0 0
        %1117 = vmatprep.subr.bf16.mxu0 0
        %1118 = vmatpush1.bf16.xpose.msra.mxu0 0
        %1119 = vmatprep.subr.bf16.mxu0 0
        %1120 = vmatpush1.bf16.xpose.msra.mxu0 0
        %1121 = vmatprep.subr.bf16.mxu0 0
        %1122 = vmatpush1.bf16.xpose.msra.mxu0 0
        %1123 = vmatprep.mubr.bf16.mxu0 0
        %1124 = vmatmul.mubr.bf16.gmra.mrb[0].mxu0 %v1086
        %v1125 = vpop.f32.mrb[0].mxu0
        %v1126 = vadd.f32 0.0, %v1125
        %v1127 = vpop.f32.mrb[0].mxu0
        %v1128 = vpop.f32.mrb[0].mxu0
        %v1129 = vpop.f32.mrb[0].mxu0
        %1130 = vdwg.mxu0
        %v1132 = vsel %vm616, %v1082, 0
        %v1135 = vsel %vm616, %v1084, 0
        %1137 = vmatprep.subr.bf16.mxu0 0
        %1138 = vmatpush1.bf16.xpose.msra.mxu0 %v1135
        %1139 = vmatprep.subr.bf16.mxu0 0
        %1140 = vmatpush1.bf16.xpose.msra.mxu0 0
        %1141 = vmatprep.subr.bf16.mxu0 0
        %1142 = vmatpush1.bf16.xpose.msra.mxu0 0
        %1143 = vmatprep.subr.bf16.mxu0 0
        %1144 = vmatpush1.bf16.xpose.msra.mxu0 0
        %1145 = vmatprep.subr.bf16.mxu0 0
        %1146 = vmatpush1.bf16.xpose.msra.mxu0 0
        %1147 = vmatprep.subr.bf16.mxu0 0
        %1148 = vmatpush1.bf16.xpose.msra.mxu0 0
        %1149 = vmatprep.subr.bf16.mxu0 0
        %1150 = vmatpush1.bf16.xpose.msra.mxu0 0
        %1151 = vmatprep.subr.bf16.mxu0 0
        %1152 = vmatpush1.bf16.xpose.msra.mxu0 0
        %1153 = vmatprep.subr.bf16.mxu0 0
        %1154 = vmatpush1.bf16.xpose.msra.mxu0 0
        %1155 = vmatprep.subr.bf16.mxu0 0
        %1156 = vmatpush1.bf16.xpose.msra.mxu0 0
        %1157 = vmatprep.subr.bf16.mxu0 0
        %1158 = vmatpush1.bf16.xpose.msra.mxu0 0
        %1159 = vmatprep.subr.bf16.mxu0 0
        %1160 = vmatpush1.bf16.xpose.msra.mxu0 0
        %1161 = vmatprep.subr.bf16.mxu0 0
        %1162 = vmatpush1.bf16.xpose.msra.mxu0 0
        %1163 = vmatprep.subr.bf16.mxu0 0
        %1164 = vmatpush1.bf16.xpose.msra.mxu0 0
        %1165 = vmatprep.subr.bf16.mxu0 0
        %1166 = vmatpush1.bf16.xpose.msra.mxu0 0
        %1167 = vmatprep.subr.bf16.mxu0 0
        %1168 = vmatpush1.bf16.xpose.msra.mxu0 0
        %1169 = vmatprep.mubr.bf16.mxu0 0
        %1170 = vmatmul.mubr.bf16.gmra.mrb[0].mxu0 %v1132
        %v1171 = vpop.f32.mrb[0].mxu0
        %v1172 = vadd.f32 0.0, %v1171
        %v1173 = vpop.f32.mrb[0].mxu0
        %v1174 = vpop.f32.mrb[0].mxu0
        %v1175 = vpop.f32.mrb[0].mxu0
        %1176 = vdwg.mxu0
        %v1177 = vmul.f32 %v1126, 0.17677669
        %v1178 = vmul.f32 %v1172, 0.17677669
        %v1179 = vsel %vm492, %v1177, -inf
        %1180 = vmax.xlane.f32.xlu0 %v1179
        %v1181 = vpop.xlane.xlu0 %1180
        %v1182 = vsel %vm492, %v1178, -inf
        %1183 = vmax.xlane.f32.xlu0 %v1182
        %v1184 = vpop.xlane.xlu0 %1183
        %v1185 = vsub.f32 %v1177, %v1181
        %v1186 = vsub.f32 %v1178, %v1184
        %v1187 = vmul.f32 %v1185, 1.442695
        %v1188 = vpow.pop %v1187
        %v1189 = vmul.f32 %v1186, 1.442695
        %v1190 = vpow.pop %v1189
        %v1191 = vsel %vm492, %v1188, 0.0
        %1192 = vadd.xlane.f32.xlu0 %v1191
        %v1193 = vpop.xlane.xlu0 %1192
        %v1194 = vsel %vm492, %v1190, 0.0
        %1195 = vadd.xlane.f32.xlu0 %v1194
        %v1196 = vpop.xlane.xlu0 %1195
        %v1197 = vrcp.pop %v1193
        %v1198 = vrcp.pop %v1196
        %v1199 = vmul.f32 %v1188, %v1197
        %v1200 = vmul.f32 %v1190, %v1198
        %v1201 = vpack.c.bf16 %v1199, %v1199
        %v1202 = vpack.c.bf16 %v1200, %v1200
        %v1203 = vpack.c.bf16 %v1070, %v1067
        %v1204 = vpack.c.bf16 %v1078, %v1075
        %v1206 = vsel %vm492, %v1201, 0
        %1208 = vmatprep.subr.bf16.mxu0 0
        %1209 = vmatpush1.bf16.msra.mxu0 %v1203
        %1210 = vmatprep.subr.bf16.mxu0 0
        %1211 = vmatpush1.bf16.msra.mxu0 0
        %1212 = vmatprep.subr.bf16.mxu0 0
        %1213 = vmatpush1.bf16.msra.mxu0 0
        %1214 = vmatprep.subr.bf16.mxu0 0
        %1215 = vmatpush1.bf16.msra.mxu0 0
        %1216 = vmatprep.subr.bf16.mxu0 0
        %1217 = vmatpush1.bf16.msra.mxu0 0
        %1218 = vmatprep.subr.bf16.mxu0 0
        %1219 = vmatpush1.bf16.msra.mxu0 0
        %1220 = vmatprep.subr.bf16.mxu0 0
        %1221 = vmatpush1.bf16.msra.mxu0 0
        %1222 = vmatprep.subr.bf16.mxu0 0
        %1223 = vmatpush1.bf16.msra.mxu0 0
        %1224 = vmatprep.subr.bf16.mxu0 0
        %1225 = vmatpush1.bf16.msra.mxu0 0
        %1226 = vmatprep.subr.bf16.mxu0 0
        %1227 = vmatpush1.bf16.msra.mxu0 0
        %1228 = vmatprep.subr.bf16.mxu0 0
        %1229 = vmatpush1.bf16.msra.mxu0 0
        %1230 = vmatprep.subr.bf16.mxu0 0
        %1231 = vmatpush1.bf16.msra.mxu0 0
        %1232 = vmatprep.subr.bf16.mxu0 0
        %1233 = vmatpush1.bf16.msra.mxu0 0
        %1234 = vmatprep.subr.bf16.mxu0 0
        %1235 = vmatpush1.bf16.msra.mxu0 0
        %1236 = vmatprep.subr.bf16.mxu0 0
        %1237 = vmatpush1.bf16.msra.mxu0 0
        %1238 = vmatprep.subr.bf16.mxu0 0
        %1239 = vmatpush1.bf16.msra.mxu0 0
        %1240 = vmatprep.mubr.bf16.mxu0 0
        %1241 = vmatmul.mubr.bf16.gmra.mrb[0].mxu0 %v1206
        %v1242 = vpop.f32.mrb[0].mxu0
        %v1243 = vadd.f32 0.0, %v1242
        %v1244 = vpop.f32.mrb[0].mxu0
        %v1245 = vpop.f32.mrb[0].mxu0
        %v1246 = vpop.f32.mrb[0].mxu0
        %1247 = vdwg.mxu0
        %v1249 = vsel %vm492, %v1202, 0
        %1251 = vmatprep.subr.bf16.mxu0 0
        %1252 = vmatpush1.bf16.msra.mxu0 %v1204
        %1253 = vmatprep.subr.bf16.mxu0 0
        %1254 = vmatpush1.bf16.msra.mxu0 0
        %1255 = vmatprep.subr.bf16.mxu0 0
        %1256 = vmatpush1.bf16.msra.mxu0 0
        %1257 = vmatprep.subr.bf16.mxu0 0
        %1258 = vmatpush1.bf16.msra.mxu0 0
        %1259 = vmatprep.subr.bf16.mxu0 0
        %1260 = vmatpush1.bf16.msra.mxu0 0
        %1261 = vmatprep.subr.bf16.mxu0 0
        %1262 = vmatpush1.bf16.msra.mxu0 0
        %1263 = vmatprep.subr.bf16.mxu0 0
        %1264 = vmatpush1.bf16.msra.mxu0 0
        %1265 = vmatprep.subr.bf16.mxu0 0
        %1266 = vmatpush1.bf16.msra.mxu0 0
        %1267 = vmatprep.subr.bf16.mxu0 0
        %1268 = vmatpush1.bf16.msra.mxu0 0
        %1269 = vmatprep.subr.bf16.mxu0 0
        %1270 = vmatpush1.bf16.msra.mxu0 0
        %1271 = vmatprep.subr.bf16.mxu0 0
        %1272 = vmatpush1.bf16.msra.mxu0 0
        %1273 = vmatprep.subr.bf16.mxu0 0
        %1274 = vmatpush1.bf16.msra.mxu0 0
        %1275 = vmatprep.subr.bf16.mxu0 0
        %1276 = vmatpush1.bf16.msra.mxu0 0
        %1277 = vmatprep.subr.bf16.mxu0 0
        %1278 = vmatpush1.bf16.msra.mxu0 0
        %1279 = vmatprep.subr.bf16.mxu0 0
        %1280 = vmatpush1.bf16.msra.mxu0 0
        %1281 = vmatprep.subr.bf16.mxu0 0
        %1282 = vmatpush1.bf16.msra.mxu0 0
        %1283 = vmatprep.mubr.bf16.mxu0 0
        %1284 = vmatmul.mubr.bf16.gmra.mrb[0].mxu0 %v1249
        %v1285 = vpop.f32.mrb[0].mxu0
        %v1286 = vadd.f32 0.0, %v1285
        %v1287 = vpop.f32.mrb[0].mxu0
        %v1288 = vpop.f32.mrb[0].mxu0
        %v1289 = vpop.f32.mrb[0].mxu0
        %1290 = vdwg.mxu0
        %v1291 = vadd.f32 %v943, %v1243
        %v1292 = vadd.f32 %v946, %v1286
        %v1293 = vpack.c.bf16 %v1292, %v1291
        %s1294 = scalar_lea.vmem %s8, 4
        %v1295 = vld [vmem:[%s1294] sm:$0xf]
        %v1297 = vsel %vm616, %v1293, 0
        %v1300 = vsel %vm830, %v1295, 0
        %1302 = vmatprep.subr.bf16.mxu0 0
        %1303 = vmatpush1.bf16.msra.mxu0 %v1300
        %1304 = vmatprep.subr.bf16.mxu0 0
        %1305 = vmatpush1.bf16.msra.mxu0 0
        %1306 = vmatprep.subr.bf16.mxu0 0
        %1307 = vmatpush1.bf16.msra.mxu0 0
        %1308 = vmatprep.subr.bf16.mxu0 0
        %1309 = vmatpush1.bf16.msra.mxu0 0
        %1310 = vmatprep.subr.bf16.mxu0 0
        %1311 = vmatpush1.bf16.msra.mxu0 0
        %1312 = vmatprep.subr.bf16.mxu0 0
        %1313 = vmatpush1.bf16.msra.mxu0 0
        %1314 = vmatprep.subr.bf16.mxu0 0
        %1315 = vmatpush1.bf16.msra.mxu0 0
        %1316 = vmatprep.subr.bf16.mxu0 0
        %1317 = vmatpush1.bf16.msra.mxu0 0
        %1318 = vmatprep.subr.bf16.mxu0 0
        %1319 = vmatpush1.bf16.msra.mxu0 0
        %1320 = vmatprep.subr.bf16.mxu0 0
        %1321 = vmatpush1.bf16.msra.mxu0 0
        %1322 = vmatprep.subr.bf16.mxu0 0
        %1323 = vmatpush1.bf16.msra.mxu0 0
        %1324 = vmatprep.subr.bf16.mxu0 0
        %1325 = vmatpush1.bf16.msra.mxu0 0
        %1326 = vmatprep.subr.bf16.mxu0 0
        %1327 = vmatpush1.bf16.msra.mxu0 0
        %1328 = vmatprep.subr.bf16.mxu0 0
        %1329 = vmatpush1.bf16.msra.mxu0 0
        %1330 = vmatprep.subr.bf16.mxu0 0
        %1331 = vmatpush1.bf16.msra.mxu0 0
        %1332 = vmatprep.subr.bf16.mxu0 0
        %1333 = vmatpush1.bf16.msra.mxu0 0
        %1334 = vmatprep.mubr.bf16.mxu0 0
        %1335 = vmatmul.mubr.bf16.gmra.mrb[0].mxu0 %v1297
        %v1336 = vpop.f32.mrb[0].mxu0
        %v1337 = vadd.f32 0.0, %v1336
        %v1338 = vpop.f32.mrb[0].mxu0
        %v1339 = vpop.f32.mrb[0].mxu0
        %v1340 = vadd.f32 0.0, %v1339
        %v1341 = vpop.f32.mrb[0].mxu0
        %1342 = vdwg.mxu0
        %v1343 = vadd.f32 %v881, %v1337
        %v1344 = vadd.f32 %v882, %v1340
        %s1345 = scalar_lea.vmem %s2, 32
        %v1346 = vld [vmem:[%s1345] sm:$0xf]
        %v1347 = vld [vmem:[%s1345 + $0x4] sm:$0xf]
        %v1348 = vld [vmem:[%s1345 + $0x8] sm:$0xf]
        %v1349 = vld [vmem:[%s1345 + $0xc] sm:$0xf]
        %s1350 = scalar_lea.vmem %s3, 2
        %v1351 = vld [vmem:[%s1350] sm:$0x1]
        %v1353 = vlaneseq
        %v1354 = vshrl.u32 %v1353, 7
        %v1355 = vsub.s32 0, %v1354
        %v1356 = vrot.slane %v1351, %v1355
        %v1362 = vunpack.c.l.b16 %v1346
        %v1363 = vunpack.c.l.b16 %v1347
        %v1364 = vunpack.c.l.b16 %v1348
        %v1365 = vunpack.c.l.b16 %v1349
        %v1366 = vpack.c.b16 %v1363, %v1362
        %v1367 = vpack.c.b16 %v1365, %v1364
        %1370 = vmatprep.subr.bf16.mxu0 0
        %1371 = vmatpush1.bf16.msra.mxu0 %v1366
        %1372 = vmatprep.subr.bf16.mxu0 0
        %1373 = vmatpush1.bf16.msra.mxu0 %v1367
        %1374 = vmatprep.subr.bf16.mxu0 0
        %1375 = vmatpush1.bf16.msra.mxu0 0
        %1376 = vmatprep.subr.bf16.mxu0 0
        %1377 = vmatpush1.bf16.msra.mxu0 0
        %1378 = vmatprep.subr.bf16.mxu0 0
        %1379 = vmatpush1.bf16.msra.mxu0 0
        %1380 = vmatprep.subr.bf16.mxu0 0
        %1381 = vmatpush1.bf16.msra.mxu0 0
        %1382 = vmatprep.subr.bf16.mxu0 0
        %1383 = vmatpush1.bf16.msra.mxu0 0
        %1384 = vmatprep.subr.bf16.mxu0 0
        %1385 = vmatpush1.bf16.msra.mxu0 0
        %1386 = vmatprep.subr.bf16.mxu0 0
        %1387 = vmatpush1.bf16.msra.mxu0 0
        %1388 = vmatprep.subr.bf16.mxu0 0
        %1389 = vmatpush1.bf16.msra.mxu0 0
        %1390 = vmatprep.subr.bf16.mxu0 0
        %1391 = vmatpush1.bf16.msra.mxu0 0
        %1392 = vmatprep.subr.bf16.mxu0 0
        %1393 = vmatpush1.bf16.msra.mxu0 0
        %1394 = vmatprep.subr.bf16.mxu0 0
        %1395 = vmatpush1.bf16.msra.mxu0 0
        %1396 = vmatprep.subr.bf16.mxu0 0
        %1397 = vmatpush1.bf16.msra.mxu0 0
        %1398 = vmatprep.subr.bf16.mxu0 0
        %1399 = vmatpush1.bf16.msra.mxu0 0
        %1400 = vmatprep.subr.bf16.mxu0 0
        %1401 = vmatpush1.bf16.msra.mxu0 0
        %1402 = vmatprep.mubr.bf16.mxu0 0
        %1403 = vmatmul.mubr.bf16.gmra.mrb[0].mxu0 %v424
        %v1404 = vpop.f32.mrb[0].mxu0
        %v1405 = vadd.f32 %v1356, %v1404
        %v1406 = vpop.f32.mrb[0].mxu0
        %v1407 = vpop.f32.mrb[0].mxu0
        %v1408 = vadd.f32 %v1356, %v1407
        %v1409 = vpop.f32.mrb[0].mxu0
        %1410 = vdwg.mxu0
        %s1411 = scalar_lea.vmem %s4, 16
        %v1412 = vld [vmem:[%s1411] sm:$0xf]
        %v1413 = vld [vmem:[%s1411 + $0x4] sm:$0xf]
        %s1414 = scalar_lea.vmem %s5, 2
        %v1415 = vld [vmem:[%s1414] sm:$0x1]
        %v1417 = vlaneseq
        %v1418 = vshrl.u32 %v1417, 7
        %v1419 = vsub.s32 0, %v1418
        %v1420 = vrot.slane %v1415, %v1419
        %v1424 = vunpack.c.l.b16 %v1412
        %v1425 = vunpack.c.l.b16 %v1413
        %v1426 = vpack.c.b16 %v1425, %v1424
        %1428 = vmatprep.subr.bf16.mxu0 0
        %1429 = vmatpush1.bf16.msra.mxu0 %v1426
        %1430 = vmatprep.subr.bf16.mxu0 0
        %1431 = vmatpush1.bf16.msra.mxu0 0
        %1432 = vmatprep.subr.bf16.mxu0 0
        %1433 = vmatpush1.bf16.msra.mxu0 0
        %1434 = vmatprep.subr.bf16.mxu0 0
        %1435 = vmatpush1.bf16.msra.mxu0 0
        %1436 = vmatprep.subr.bf16.mxu0 0
        %1437 = vmatpush1.bf16.msra.mxu0 0
        %1438 = vmatprep.subr.bf16.mxu0 0
        %1439 = vmatpush1.bf16.msra.mxu0 0
        %1440 = vmatprep.subr.bf16.mxu0 0
        %1441 = vmatpush1.bf16.msra.mxu0 0
        %1442 = vmatprep.subr.bf16.mxu0 0
        %1443 = vmatpush1.bf16.msra.mxu0 0
        %1444 = vmatprep.subr.bf16.mxu0 0
        %1445 = vmatpush1.bf16.msra.mxu0 0
        %1446 = vmatprep.subr.bf16.mxu0 0
        %1447 = vmatpush1.bf16.msra.mxu0 0
        %1448 = vmatprep.subr.bf16.mxu0 0
        %1449 = vmatpush1.bf16.msra.mxu0 0
        %1450 = vmatprep.subr.bf16.mxu0 0
        %1451 = vmatpush1.bf16.msra.mxu0 0
        %1452 = vmatprep.subr.bf16.mxu0 0
        %1453 = vmatpush1.bf16.msra.mxu0 0
        %1454 = vmatprep.subr.bf16.mxu0 0
        %1455 = vmatpush1.bf16.msra.mxu0 0
        %1456 = vmatprep.subr.bf16.mxu0 0
        %1457 = vmatpush1.bf16.msra.mxu0 0
        %1458 = vmatprep.subr.bf16.mxu0 0
        %1459 = vmatpush1.bf16.msra.mxu0 0
        %1460 = vmatprep.mubr.bf16.mxu0 0
        %1461 = vmatmul.mubr.bf16.gmra.mrb[0].mxu0 %v494
        %v1462 = vpop.f32.mrb[0].mxu0
        %v1463 = vadd.f32 %v1420, %v1462
        %v1464 = vpop.f32.mrb[0].mxu0
        %v1465 = vpop.f32.mrb[0].mxu0
        %v1466 = vadd.f32 %v1420, %v1465
        %v1467 = vpop.f32.mrb[0].mxu0
        %1468 = vmatprep.mubr.bf16.mxu0 0
        %1469 = vmatmul.mubr.bf16.gmra.mrb[0].mxu0 %v497
        %v1470 = vpop.f32.mrb[0].mxu0
        %v1471 = vadd.f32 %v1420, %v1470
        %v1472 = vpop.f32.mrb[0].mxu0
        %v1473 = vpop.f32.mrb[0].mxu0
        %v1474 = vadd.f32 %v1420, %v1473
        %v1475 = vpop.f32.mrb[0].mxu0
        %1476 = vdwg.mxu0
        %s1477 = scalar_lea.vmem %s6, 16
        %v1478 = vld [vmem:[%s1477] sm:$0xf]
        %v1479 = vld [vmem:[%s1477 + $0x4] sm:$0xf]
        %s1480 = scalar_lea.vmem %s7, 2
        %v1481 = vld [vmem:[%s1480] sm:$0x1]
        %v1483 = vlaneseq
        %v1484 = vshrl.u32 %v1483, 7
        %v1485 = vsub.s32 0, %v1484
        %v1486 = vrot.slane %v1481, %v1485
        %v1490 = vunpack.c.l.b16 %v1478
        %v1491 = vunpack.c.l.b16 %v1479
        %v1492 = vpack.c.b16 %v1491, %v1490
        %1494 = vmatprep.subr.bf16.mxu0 0
        %1495 = vmatpush1.bf16.msra.mxu0 %v1492
        %1496 = vmatprep.subr.bf16.mxu0 0
        %1497 = vmatpush1.bf16.msra.mxu0 0
        %1498 = vmatprep.subr.bf16.mxu0 0
        %1499 = vmatpush1.bf16.msra.mxu0 0
        %1500 = vmatprep.subr.bf16.mxu0 0
        %1501 = vmatpush1.bf16.msra.mxu0 0
        %1502 = vmatprep.subr.bf16.mxu0 0
        %1503 = vmatpush1.bf16.msra.mxu0 0
        %1504 = vmatprep.subr.bf16.mxu0 0
        %1505 = vmatpush1.bf16.msra.mxu0 0
        %1506 = vmatprep.subr.bf16.mxu0 0
        %1507 = vmatpush1.bf16.msra.mxu0 0
        %1508 = vmatprep.subr.bf16.mxu0 0
        %1509 = vmatpush1.bf16.msra.mxu0 0
        %1510 = vmatprep.subr.bf16.mxu0 0
        %1511 = vmatpush1.bf16.msra.mxu0 0
        %1512 = vmatprep.subr.bf16.mxu0 0
        %1513 = vmatpush1.bf16.msra.mxu0 0
        %1514 = vmatprep.subr.bf16.mxu0 0
        %1515 = vmatpush1.bf16.msra.mxu0 0
        %1516 = vmatprep.subr.bf16.mxu0 0
        %1517 = vmatpush1.bf16.msra.mxu0 0
        %1518 = vmatprep.subr.bf16.mxu0 0
        %1519 = vmatpush1.bf16.msra.mxu0 0
        %1520 = vmatprep.subr.bf16.mxu0 0
        %1521 = vmatpush1.bf16.msra.mxu0 0
        %1522 = vmatprep.subr.bf16.mxu0 0
        %1523 = vmatpush1.bf16.msra.mxu0 0
        %1524 = vmatprep.subr.bf16.mxu0 0
        %1525 = vmatpush1.bf16.msra.mxu0 0
        %1526 = vmatprep.mubr.bf16.mxu0 0
        %1527 = vmatmul.mubr.bf16.gmra.mrb[0].mxu0 %v494
        %v1528 = vpop.f32.mrb[0].mxu0
        %v1529 = vadd.f32 %v1486, %v1528
        %v1530 = vpop.f32.mrb[0].mxu0
        %v1531 = vpop.f32.mrb[0].mxu0
        %v1532 = vadd.f32 %v1486, %v1531
        %v1533 = vpop.f32.mrb[0].mxu0
        %1534 = vmatprep.mubr.bf16.mxu0 0
        %1535 = vmatmul.mubr.bf16.gmra.mrb[0].mxu0 %v497
        %v1536 = vpop.f32.mrb[0].mxu0
        %v1537 = vadd.f32 %v1486, %v1536
        %v1538 = vpop.f32.mrb[0].mxu0
        %v1539 = vpop.f32.mrb[0].mxu0
        %v1540 = vadd.f32 %v1486, %v1539
        %v1541 = vpop.f32.mrb[0].mxu0
        %1542 = vdwg.mxu0
        %v1543 = vpack.c.bf16 %v1405, %v1405
        %v1544 = vpack.c.bf16 %v1408, %v1408
        %v1545 = vpack.c.bf16 %v1466, %v1463
        %v1546 = vpack.c.bf16 %v1474, %v1471
        %v1548 = vsel %vm616, %v1543, 0
        %v1551 = vsel %vm616, %v1545, 0
        %1553 = vmatprep.subr.bf16.mxu0 0
        %1554 = vmatpush1.bf16.xpose.msra.mxu0 %v1551
        %1555 = vmatprep.subr.bf16.mxu0 0
        %1556 = vmatpush1.bf16.xpose.msra.mxu0 0
        %1557 = vmatprep.subr.bf16.mxu0 0
        %1558 = vmatpush1.bf16.xpose.msra.mxu0 0
        %1559 = vmatprep.subr.bf16.mxu0 0
        %1560 = vmatpush1.bf16.xpose.msra.mxu0 0
        %1561 = vmatprep.subr.bf16.mxu0 0
        %1562 = vmatpush1.bf16.xpose.msra.mxu0 0
        %1563 = vmatprep.subr.bf16.mxu0 0
        %1564 = vmatpush1.bf16.xpose.msra.mxu0 0
        %1565 = vmatprep.subr.bf16.mxu0 0
        %1566 = vmatpush1.bf16.xpose.msra.mxu0 0
        %1567 = vmatprep.subr.bf16.mxu0 0
        %1568 = vmatpush1.bf16.xpose.msra.mxu0 0
        %1569 = vmatprep.subr.bf16.mxu0 0
        %1570 = vmatpush1.bf16.xpose.msra.mxu0 0
        %1571 = vmatprep.subr.bf16.mxu0 0
        %1572 = vmatpush1.bf16.xpose.msra.mxu0 0
        %1573 = vmatprep.subr.bf16.mxu0 0
        %1574 = vmatpush1.bf16.xpose.msra.mxu0 0
        %1575 = vmatprep.subr.bf16.mxu0 0
        %1576 = vmatpush1.bf16.xpose.msra.mxu0 0
        %1577 = vmatprep.subr.bf16.mxu0 0
        %1578 = vmatpush1.bf16.xpose.msra.mxu0 0
        %1579 = vmatprep.subr.bf16.mxu0 0
        %1580 = vmatpush1.bf16.xpose.msra.mxu0 0
        %1581 = vmatprep.subr.bf16.mxu0 0
        %1582 = vmatpush1.bf16.xpose.msra.mxu0 0
        %1583 = vmatprep.subr.bf16.mxu0 0
        %1584 = vmatpush1.bf16.xpose.msra.mxu0 0
        %1585 = vmatprep.mubr.bf16.mxu0 0
        %1586 = vmatmul.mubr.bf16.gmra.mrb[0].mxu0 %v1548
        %v1587 = vpop.f32.mrb[0].mxu0
        %v1588 = vadd.f32 0.0, %v1587
        %v1589 = vpop.f32.mrb[0].mxu0
        %v1590 = vpop.f32.mrb[0].mxu0
        %v1591 = vpop.f32.mrb[0].mxu0
        %1592 = vdwg.mxu0
        %v1594 = vsel %vm616, %v1544, 0
        %v1597 = vsel %vm616, %v1546, 0
        %1599 = vmatprep.subr.bf16.mxu0 0
        %1600 = vmatpush1.bf16.xpose.msra.mxu0 %v1597
        %1601 = vmatprep.subr.bf16.mxu0 0
        %1602 = vmatpush1.bf16.xpose.msra.mxu0 0
        %1603 = vmatprep.subr.bf16.mxu0 0
        %1604 = vmatpush1.bf16.xpose.msra.mxu0 0
        %1605 = vmatprep.subr.bf16.mxu0 0
        %1606 = vmatpush1.bf16.xpose.msra.mxu0 0
        %1607 = vmatprep.subr.bf16.mxu0 0
        %1608 = vmatpush1.bf16.xpose.msra.mxu0 0
        %1609 = vmatprep.subr.bf16.mxu0 0
        %1610 = vmatpush1.bf16.xpose.msra.mxu0 0
        %1611 = vmatprep.subr.bf16.mxu0 0
        %1612 = vmatpush1.bf16.xpose.msra.mxu0 0
        %1613 = vmatprep.subr.bf16.mxu0 0
        %1614 = vmatpush1.bf16.xpose.msra.mxu0 0
        %1615 = vmatprep.subr.bf16.mxu0 0
        %1616 = vmatpush1.bf16.xpose.msra.mxu0 0
        %1617 = vmatprep.subr.bf16.mxu0 0
        %1618 = vmatpush1.bf16.xpose.msra.mxu0 0
        %1619 = vmatprep.subr.bf16.mxu0 0
        %1620 = vmatpush1.bf16.xpose.msra.mxu0 0
        %1621 = vmatprep.subr.bf16.mxu0 0
        %1622 = vmatpush1.bf16.xpose.msra.mxu0 0
        %1623 = vmatprep.subr.bf16.mxu0 0
        %1624 = vmatpush1.bf16.xpose.msra.mxu0 0
        %1625 = vmatprep.subr.bf16.mxu0 0
        %1626 = vmatpush1.bf16.xpose.msra.mxu0 0
        %1627 = vmatprep.subr.bf16.mxu0 0
        %1628 = vmatpush1.bf16.xpose.msra.mxu0 0
        %1629 = vmatprep.subr.bf16.mxu0 0
        %1630 = vmatpush1.bf16.xpose.msra.mxu0 0
        %1631 = vmatprep.mubr.bf16.mxu0 0
        %1632 = vmatmul.mubr.bf16.gmra.mrb[0].mxu0 %v1594
        %v1633 = vpop.f32.mrb[0].mxu0
        %v1634 = vadd.f32 0.0, %v1633
        %v1635 = vpop.f32.mrb[0].mxu0
        %v1636 = vpop.f32.mrb[0].mxu0
        %v1637 = vpop.f32.mrb[0].mxu0
        %1638 = vdwg.mxu0
        %v1639 = vmul.f32 %v1588, 0.17677669
        %v1640 = vmul.f32 %v1634, 0.17677669
        %v1641 = vsel %vm492, %v1639, -inf
        %1642 = vmax.xlane.f32.xlu0 %v1641
        %v1643 = vpop.xlane.xlu0 %1642
        %v1644 = vsel %vm492, %v1640, -inf
        %1645 = vmax.xlane.f32.xlu0 %v1644
        %v1646 = vpop.xlane.xlu0 %1645
        %v1647 = vsub.f32 %v1639, %v1643
        %v1648 = vsub.f32 %v1640, %v1646
        %v1649 = vmul.f32 %v1647, 1.442695
        %v1650 = vpow.pop %v1649
        %v1651 = vmul.f32 %v1648, 1.442695
        %v1652 = vpow.pop %v1651
        %v1653 = vsel %vm492, %v1650, 0.0
        %1654 = vadd.xlane.f32.xlu0 %v1653
        %v1655 = vpop.xlane.xlu0 %1654
        %v1656 = vsel %vm492, %v1652, 0.0
        %1657 = vadd.xlane.f32.xlu0 %v1656
        %v1658 = vpop.xlane.xlu0 %1657
        %v1659 = vrcp.pop %v1655
        %v1660 = vrcp.pop %v1658
        %v1661 = vmul.f32 %v1650, %v1659
        %v1662 = vmul.f32 %v1652, %v1660
        %v1663 = vpack.c.bf16 %v1661, %v1661
        %v1664 = vpack.c.bf16 %v1662, %v1662
        %v1665 = vpack.c.bf16 %v1532, %v1529
        %v1666 = vpack.c.bf16 %v1540, %v1537
        %v1668 = vsel %vm492, %v1663, 0
        %1670 = vmatprep.subr.bf16.mxu0 0
        %1671 = vmatpush1.bf16.msra.mxu0 %v1665
        %1672 = vmatprep.subr.bf16.mxu0 0
        %1673 = vmatpush1.bf16.msra.mxu0 0
        %1674 = vmatprep.subr.bf16.mxu0 0
        %1675 = vmatpush1.bf16.msra.mxu0 0
        %1676 = vmatprep.subr.bf16.mxu0 0
        %1677 = vmatpush1.bf16.msra.mxu0 0
        %1678 = vmatprep.subr.bf16.mxu0 0
        %1679 = vmatpush1.bf16.msra.mxu0 0
        %1680 = vmatprep.subr.bf16.mxu0 0
        %1681 = vmatpush1.bf16.msra.mxu0 0
        %1682 = vmatprep.subr.bf16.mxu0 0
        %1683 = vmatpush1.bf16.msra.mxu0 0
        %1684 = vmatprep.subr.bf16.mxu0 0
        %1685 = vmatpush1.bf16.msra.mxu0 0
        %1686 = vmatprep.subr.bf16.mxu0 0
        %1687 = vmatpush1.bf16.msra.mxu0 0
        %1688 = vmatprep.subr.bf16.mxu0 0
        %1689 = vmatpush1.bf16.msra.mxu0 0
        %1690 = vmatprep.subr.bf16.mxu0 0
        %1691 = vmatpush1.bf16.msra.mxu0 0
        %1692 = vmatprep.subr.bf16.mxu0 0
        %1693 = vmatpush1.bf16.msra.mxu0 0
        %1694 = vmatprep.subr.bf16.mxu0 0
        %1695 = vmatpush1.bf16.msra.mxu0 0
        %1696 = vmatprep.subr.bf16.mxu0 0
        %1697 = vmatpush1.bf16.msra.mxu0 0
        %1698 = vmatprep.subr.bf16.mxu0 0
        %1699 = vmatpush1.bf16.msra.mxu0 0
        %1700 = vmatprep.subr.bf16.mxu0 0
        %1701 = vmatpush1.bf16.msra.mxu0 0
        %1702 = vmatprep.mubr.bf16.mxu0 0
        %1703 = vmatmul.mubr.bf16.gmra.mrb[0].mxu0 %v1668
        %v1704 = vpop.f32.mrb[0].mxu0
        %v1705 = vadd.f32 0.0, %v1704
        %v1706 = vpop.f32.mrb[0].mxu0
        %v1707 = vpop.f32.mrb[0].mxu0
        %v1708 = vpop.f32.mrb[0].mxu0
        %1709 = vdwg.mxu0
        %v1711 = vsel %vm492, %v1664, 0
        %1713 = vmatprep.subr.bf16.mxu0 0
        %1714 = vmatpush1.bf16.msra.mxu0 %v1666
        %1715 = vmatprep.subr.bf16.mxu0 0
        %1716 = vmatpush1.bf16.msra.mxu0 0
        %1717 = vmatprep.subr.bf16.mxu0 0
        %1718 = vmatpush1.bf16.msra.mxu0 0
        %1719 = vmatprep.subr.bf16.mxu0 0
        %1720 = vmatpush1.bf16.msra.mxu0 0
        %1721 = vmatprep.subr.bf16.mxu0 0
        %1722 = vmatpush1.bf16.msra.mxu0 0
        %1723 = vmatprep.subr.bf16.mxu0 0
        %1724 = vmatpush1.bf16.msra.mxu0 0
        %1725 = vmatprep.subr.bf16.mxu0 0
        %1726 = vmatpush1.bf16.msra.mxu0 0
        %1727 = vmatprep.subr.bf16.mxu0 0
        %1728 = vmatpush1.bf16.msra.mxu0 0
        %1729 = vmatprep.subr.bf16.mxu0 0
        %1730 = vmatpush1.bf16.msra.mxu0 0
        %1731 = vmatprep.subr.bf16.mxu0 0
        %1732 = vmatpush1.bf16.msra.mxu0 0
        %1733 = vmatprep.subr.bf16.mxu0 0
        %1734 = vmatpush1.bf16.msra.mxu0 0
        %1735 = vmatprep.subr.bf16.mxu0 0
        %1736 = vmatpush1.bf16.msra.mxu0 0
        %1737 = vmatprep.subr.bf16.mxu0 0
        %1738 = vmatpush1.bf16.msra.mxu0 0
        %1739 = vmatprep.subr.bf16.mxu0 0
        %1740 = vmatpush1.bf16.msra.mxu0 0
        %1741 = vmatprep.subr.bf16.mxu0 0
        %1742 = vmatpush1.bf16.msra.mxu0 0
        %1743 = vmatprep.subr.bf16.mxu0 0
        %1744 = vmatpush1.bf16.msra.mxu0 0
        %1745 = vmatprep.mubr.bf16.mxu0 0
        %1746 = vmatmul.mubr.bf16.gmra.mrb[0].mxu0 %v1711
        %v1747 = vpop.f32.mrb[0].mxu0
        %v1748 = vadd.f32 0.0, %v1747
        %v1749 = vpop.f32.mrb[0].mxu0
        %v1750 = vpop.f32.mrb[0].mxu0
        %v1751 = vpop.f32.mrb[0].mxu0
        %1752 = vdwg.mxu0
        %v1753 = vadd.f32 %v1405, %v1705
        %v1754 = vadd.f32 %v1408, %v1748
        %v1755 = vpack.c.bf16 %v1754, %v1753
        %s1756 = scalar_lea.vmem %s8, 8
        %v1757 = vld [vmem:[%s1756] sm:$0xf]
        %v1759 = vsel %vm616, %v1755, 0
        %v1762 = vsel %vm830, %v1757, 0
        %1764 = vmatprep.subr.bf16.mxu0 0
        %1765 = vmatpush1.bf16.msra.mxu0 %v1762
        %1766 = vmatprep.subr.bf16.mxu0 0
        %1767 = vmatpush1.bf16.msra.mxu0 0
        %1768 = vmatprep.subr.bf16.mxu0 0
        %1769 = vmatpush1.bf16.msra.mxu0 0
        %1770 = vmatprep.subr.bf16.mxu0 0
        %1771 = vmatpush1.bf16.msra.mxu0 0
        %1772 = vmatprep.subr.bf16.mxu0 0
        %1773 = vmatpush1.bf16.msra.mxu0 0
        %1774 = vmatprep.subr.bf16.mxu0 0
        %1775 = vmatpush1.bf16.msra.mxu0 0
        %1776 = vmatprep.subr.bf16.mxu0 0
        %1777 = vmatpush1.bf16.msra.mxu0 0
        %1778 = vmatprep.subr.bf16.mxu0 0
        %1779 = vmatpush1.bf16.msra.mxu0 0
        %1780 = vmatprep.subr.bf16.mxu0 0
        %1781 = vmatpush1.bf16.msra.mxu0 0
        %1782 = vmatprep.subr.bf16.mxu0 0
        %1783 = vmatpush1.bf16.msra.mxu0 0
        %1784 = vmatprep.subr.bf16.mxu0 0
        %1785 = vmatpush1.bf16.msra.mxu0 0
        %1786 = vmatprep.subr.bf16.mxu0 0
        %1787 = vmatpush1.bf16.msra.mxu0 0
        %1788 = vmatprep.subr.bf16.mxu0 0
        %1789 = vmatpush1.bf16.msra.mxu0 0
        %1790 = vmatprep.subr.bf16.mxu0 0
        %1791 = vmatpush1.bf16.msra.mxu0 0
        %1792 = vmatprep.subr.bf16.mxu0 0
        %1793 = vmatpush1.bf16.msra.mxu0 0
        %1794 = vmatprep.subr.bf16.mxu0 0
        %1795 = vmatpush1.bf16.msra.mxu0 0
        %1796 = vmatprep.mubr.bf16.mxu0 0
        %1797 = vmatmul.mubr.bf16.gmra.mrb[0].mxu0 %v1759
        %v1798 = vpop.f32.mrb[0].mxu0
        %v1799 = vadd.f32 0.0, %v1798
        %v1800 = vpop.f32.mrb[0].mxu0
        %v1801 = vpop.f32.mrb[0].mxu0
        %v1802 = vadd.f32 0.0, %v1801
        %v1803 = vpop.f32.mrb[0].mxu0
        %1804 = vdwg.mxu0
        %v1805 = vadd.f32 %v1343, %v1799
        %v1806 = vadd.f32 %v1344, %v1802
        %s1807 = scalar_lea.vmem %s2, 48
        %v1808 = vld [vmem:[%s1807] sm:$0xf]
        %v1809 = vld [vmem:[%s1807 + $0x4] sm:$0xf]
        %v1810 = vld [vmem:[%s1807 + $0x8] sm:$0xf]
        %v1811 = vld [vmem:[%s1807 + $0xc] sm:$0xf]
        %s1812 = scalar_lea.vmem %s3, 3
        %v1813 = vld [vmem:[%s1812] sm:$0x1]
        %v1815 = vlaneseq
        %v1816 = vshrl.u32 %v1815, 7
        %v1817 = vsub.s32 0, %v1816
        %v1818 = vrot.slane %v1813, %v1817
        %v1824 = vunpack.c.l.b16 %v1808
        %v1825 = vunpack.c.l.b16 %v1809
        %v1826 = vunpack.c.l.b16 %v1810
        %v1827 = vunpack.c.l.b16 %v1811
        %v1828 = vpack.c.b16 %v1825, %v1824
        %v1829 = vpack.c.b16 %v1827, %v1826
        %1832 = vmatprep.subr.bf16.mxu0 0
        %1833 = vmatpush1.bf16.msra.mxu0 %v1828
        %1834 = vmatprep.subr.bf16.mxu0 0
        %1835 = vmatpush1.bf16.msra.mxu0 %v1829
        %1836 = vmatprep.subr.bf16.mxu0 0
        %1837 = vmatpush1.bf16.msra.mxu0 0
        %1838 = vmatprep.subr.bf16.mxu0 0
        %1839 = vmatpush1.bf16.msra.mxu0 0
        %1840 = vmatprep.subr.bf16.mxu0 0
        %1841 = vmatpush1.bf16.msra.mxu0 0
        %1842 = vmatprep.subr.bf16.mxu0 0
        %1843 = vmatpush1.bf16.msra.mxu0 0
        %1844 = vmatprep.subr.bf16.mxu0 0
        %1845 = vmatpush1.bf16.msra.mxu0 0
        %1846 = vmatprep.subr.bf16.mxu0 0
        %1847 = vmatpush1.bf16.msra.mxu0 0
        %1848 = vmatprep.subr.bf16.mxu0 0
        %1849 = vmatpush1.bf16.msra.mxu0 0
        %1850 = vmatprep.subr.bf16.mxu0 0
        %1851 = vmatpush1.bf16.msra.mxu0 0
        %1852 = vmatprep.subr.bf16.mxu0 0
        %1853 = vmatpush1.bf16.msra.mxu0 0
        %1854 = vmatprep.subr.bf16.mxu0 0
        %1855 = vmatpush1.bf16.msra.mxu0 0
        %1856 = vmatprep.subr.bf16.mxu0 0
        %1857 = vmatpush1.bf16.msra.mxu0 0
        %1858 = vmatprep.subr.bf16.mxu0 0
        %1859 = vmatpush1.bf16.msra.mxu0 0
        %1860 = vmatprep.subr.bf16.mxu0 0
        %1861 = vmatpush1.bf16.msra.mxu0 0
        %1862 = vmatprep.subr.bf16.mxu0 0
        %1863 = vmatpush1.bf16.msra.mxu0 0
        %1864 = vmatprep.mubr.bf16.mxu0 0
        %1865 = vmatmul.mubr.bf16.gmra.mrb[0].mxu0 %v424
        %v1866 = vpop.f32.mrb[0].mxu0
        %v1867 = vadd.f32 %v1818, %v1866
        %v1868 = vpop.f32.mrb[0].mxu0
        %v1869 = vpop.f32.mrb[0].mxu0
        %v1870 = vadd.f32 %v1818, %v1869
        %v1871 = vpop.f32.mrb[0].mxu0
        %1872 = vdwg.mxu0
        %s1873 = scalar_lea.vmem %s4, 24
        %v1874 = vld [vmem:[%s1873] sm:$0xf]
        %v1875 = vld [vmem:[%s1873 + $0x4] sm:$0xf]
        %s1876 = scalar_lea.vmem %s5, 3
        %v1877 = vld [vmem:[%s1876] sm:$0x1]
        %v1879 = vlaneseq
        %v1880 = vshrl.u32 %v1879, 7
        %v1881 = vsub.s32 0, %v1880
        %v1882 = vrot.slane %v1877, %v1881
        %v1886 = vunpack.c.l.b16 %v1874
        %v1887 = vunpack.c.l.b16 %v1875
        %v1888 = vpack.c.b16 %v1887, %v1886
        %1890 = vmatprep.subr.bf16.mxu0 0
        %1891 = vmatpush1.bf16.msra.mxu0 %v1888
        %1892 = vmatprep.subr.bf16.mxu0 0
        %1893 = vmatpush1.bf16.msra.mxu0 0
        %1894 = vmatprep.subr.bf16.mxu0 0
        %1895 = vmatpush1.bf16.msra.mxu0 0
        %1896 = vmatprep.subr.bf16.mxu0 0
        %1897 = vmatpush1.bf16.msra.mxu0 0
        %1898 = vmatprep.subr.bf16.mxu0 0
        %1899 = vmatpush1.bf16.msra.mxu0 0
        %1900 = vmatprep.subr.bf16.mxu0 0
        %1901 = vmatpush1.bf16.msra.mxu0 0
        %1902 = vmatprep.subr.bf16.mxu0 0
        %1903 = vmatpush1.bf16.msra.mxu0 0
        %1904 = vmatprep.subr.bf16.mxu0 0
        %1905 = vmatpush1.bf16.msra.mxu0 0
        %1906 = vmatprep.subr.bf16.mxu0 0
        %1907 = vmatpush1.bf16.msra.mxu0 0
        %1908 = vmatprep.subr.bf16.mxu0 0
        %1909 = vmatpush1.bf16.msra.mxu0 0
        %1910 = vmatprep.subr.bf16.mxu0 0
        %1911 = vmatpush1.bf16.msra.mxu0 0
        %1912 = vmatprep.subr.bf16.mxu0 0
        %1913 = vmatpush1.bf16.msra.mxu0 0
        %1914 = vmatprep.subr.bf16.mxu0 0
        %1915 = vmatpush1.bf16.msra.mxu0 0
        %1916 = vmatprep.subr.bf16.mxu0 0
        %1917 = vmatpush1.bf16.msra.mxu0 0
        %1918 = vmatprep.subr.bf16.mxu0 0
        %1919 = vmatpush1.bf16.msra.mxu0 0
        %1920 = vmatprep.subr.bf16.mxu0 0
        %1921 = vmatpush1.bf16.msra.mxu0 0
        %1922 = vmatprep.mubr.bf16.mxu0 0
        %1923 = vmatmul.mubr.bf16.gmra.mrb[0].mxu0 %v494
        %v1924 = vpop.f32.mrb[0].mxu0
        %v1925 = vadd.f32 %v1882, %v1924
        %v1926 = vpop.f32.mrb[0].mxu0
        %v1927 = vpop.f32.mrb[0].mxu0
        %v1928 = vadd.f32 %v1882, %v1927
        %v1929 = vpop.f32.mrb[0].mxu0
        %1930 = vmatprep.mubr.bf16.mxu0 0
        %1931 = vmatmul.mubr.bf16.gmra.mrb[0].mxu0 %v497
        %v1932 = vpop.f32.mrb[0].mxu0
        %v1933 = vadd.f32 %v1882, %v1932
        %v1934 = vpop.f32.mrb[0].mxu0
        %v1935 = vpop.f32.mrb[0].mxu0
        %v1936 = vadd.f32 %v1882, %v1935
        %v1937 = vpop.f32.mrb[0].mxu0
        %1938 = vdwg.mxu0
        %s1939 = scalar_lea.vmem %s6, 24
        %v1940 = vld [vmem:[%s1939] sm:$0xf]
        %v1941 = vld [vmem:[%s1939 + $0x4] sm:$0xf]
        %s1942 = scalar_lea.vmem %s7, 3
        %v1943 = vld [vmem:[%s1942] sm:$0x1]
        %v1945 = vlaneseq
        %v1946 = vshrl.u32 %v1945, 7
        %v1947 = vsub.s32 0, %v1946
        %v1948 = vrot.slane %v1943, %v1947
        %v1952 = vunpack.c.l.b16 %v1940
        %v1953 = vunpack.c.l.b16 %v1941
        %v1954 = vpack.c.b16 %v1953, %v1952
        %1956 = vmatprep.subr.bf16.mxu0 0
        %1957 = vmatpush1.bf16.msra.mxu0 %v1954
        %1958 = vmatprep.subr.bf16.mxu0 0
        %1959 = vmatpush1.bf16.msra.mxu0 0
        %1960 = vmatprep.subr.bf16.mxu0 0
        %1961 = vmatpush1.bf16.msra.mxu0 0
        %1962 = vmatprep.subr.bf16.mxu0 0
        %1963 = vmatpush1.bf16.msra.mxu0 0
        %1964 = vmatprep.subr.bf16.mxu0 0
        %1965 = vmatpush1.bf16.msra.mxu0 0
        %1966 = vmatprep.subr.bf16.mxu0 0
        %1967 = vmatpush1.bf16.msra.mxu0 0
        %1968 = vmatprep.subr.bf16.mxu0 0
        %1969 = vmatpush1.bf16.msra.mxu0 0
        %1970 = vmatprep.subr.bf16.mxu0 0
        %1971 = vmatpush1.bf16.msra.mxu0 0
        %1972 = vmatprep.subr.bf16.mxu0 0
        %1973 = vmatpush1.bf16.msra.mxu0 0
        %1974 = vmatprep.subr.bf16.mxu0 0
        %1975 = vmatpush1.bf16.msra.mxu0 0
        %1976 = vmatprep.subr.bf16.mxu0 0
        %1977 = vmatpush1.bf16.msra.mxu0 0
        %1978 = vmatprep.subr.bf16.mxu0 0
        %1979 = vmatpush1.bf16.msra.mxu0 0
        %1980 = vmatprep.subr.bf16.mxu0 0
        %1981 = vmatpush1.bf16.msra.mxu0 0
        %1982 = vmatprep.subr.bf16.mxu0 0
        %1983 = vmatpush1.bf16.msra.mxu0 0
        %1984 = vmatprep.subr.bf16.mxu0 0
        %1985 = vmatpush1.bf16.msra.mxu0 0
        %1986 = vmatprep.subr.bf16.mxu0 0
        %1987 = vmatpush1.bf16.msra.mxu0 0
        %1988 = vmatprep.mubr.bf16.mxu0 0
        %1989 = vmatmul.mubr.bf16.gmra.mrb[0].mxu0 %v494
        %v1990 = vpop.f32.mrb[0].mxu0
        %v1991 = vadd.f32 %v1948, %v1990
        %v1992 = vpop.f32.mrb[0].mxu0
        %v1993 = vpop.f32.mrb[0].mxu0
        %v1994 = vadd.f32 %v1948, %v1993
        %v1995 = vpop.f32.mrb[0].mxu0
        %1996 = vmatprep.mubr.bf16.mxu0 0
        %1997 = vmatmul.mubr.bf16.gmra.mrb[0].mxu0 %v497
        %v1998 = vpop.f32.mrb[0].mxu0
        %v1999 = vadd.f32 %v1948, %v1998
        %v2000 = vpop.f32.mrb[0].mxu0
        %v2001 = vpop.f32.mrb[0].mxu0
        %v2002 = vadd.f32 %v1948, %v2001
        %v2003 = vpop.f32.mrb[0].mxu0
        %2004 = vdwg.mxu0
        %v2005 = vpack.c.bf16 %v1867, %v1867
        %v2006 = vpack.c.bf16 %v1870, %v1870
        %v2007 = vpack.c.bf16 %v1928, %v1925
        %v2008 = vpack.c.bf16 %v1936, %v1933
        %v2010 = vsel %vm616, %v2005, 0
        %v2013 = vsel %vm616, %v2007, 0
        %2015 = vmatprep.subr.bf16.mxu0 0
        %2016 = vmatpush1.bf16.xpose.msra.mxu0 %v2013
        %2017 = vmatprep.subr.bf16.mxu0 0
        %2018 = vmatpush1.bf16.xpose.msra.mxu0 0
        %2019 = vmatprep.subr.bf16.mxu0 0
        %2020 = vmatpush1.bf16.xpose.msra.mxu0 0
        %2021 = vmatprep.subr.bf16.mxu0 0
        %2022 = vmatpush1.bf16.xpose.msra.mxu0 0
        %2023 = vmatprep.subr.bf16.mxu0 0
        %2024 = vmatpush1.bf16.xpose.msra.mxu0 0
        %2025 = vmatprep.subr.bf16.mxu0 0
        %2026 = vmatpush1.bf16.xpose.msra.mxu0 0
        %2027 = vmatprep.subr.bf16.mxu0 0
        %2028 = vmatpush1.bf16.xpose.msra.mxu0 0
        %2029 = vmatprep.subr.bf16.mxu0 0
        %2030 = vmatpush1.bf16.xpose.msra.mxu0 0
        %2031 = vmatprep.subr.bf16.mxu0 0
        %2032 = vmatpush1.bf16.xpose.msra.mxu0 0
        %2033 = vmatprep.subr.bf16.mxu0 0
        %2034 = vmatpush1.bf16.xpose.msra.mxu0 0
        %2035 = vmatprep.subr.bf16.mxu0 0
        %2036 = vmatpush1.bf16.xpose.msra.mxu0 0
        %2037 = vmatprep.subr.bf16.mxu0 0
        %2038 = vmatpush1.bf16.xpose.msra.mxu0 0
        %2039 = vmatprep.subr.bf16.mxu0 0
        %2040 = vmatpush1.bf16.xpose.msra.mxu0 0
        %2041 = vmatprep.subr.bf16.mxu0 0
        %2042 = vmatpush1.bf16.xpose.msra.mxu0 0
        %2043 = vmatprep.subr.bf16.mxu0 0
        %2044 = vmatpush1.bf16.xpose.msra.mxu0 0
        %2045 = vmatprep.subr.bf16.mxu0 0
        %2046 = vmatpush1.bf16.xpose.msra.mxu0 0
        %2047 = vmatprep.mubr.bf16.mxu0 0
        %2048 = vmatmul.mubr.bf16.gmra.mrb[0].mxu0 %v2010
        %v2049 = vpop.f32.mrb[0].mxu0
        %v2050 = vadd.f32 0.0, %v2049
        %v2051 = vpop.f32.mrb[0].mxu0
        %v2052 = vpop.f32.mrb[0].mxu0
        %v2053 = vpop.f32.mrb[0].mxu0
        %2054 = vdwg.mxu0
        %v2056 = vsel %vm616, %v2006, 0
        %v2059 = vsel %vm616, %v2008, 0
        %2061 = vmatprep.subr.bf16.mxu0 0
        %2062 = vmatpush1.bf16.xpose.msra.mxu0 %v2059
        %2063 = vmatprep.subr.bf16.mxu0 0
        %2064 = vmatpush1.bf16.xpose.msra.mxu0 0
        %2065 = vmatprep.subr.bf16.mxu0 0
        %2066 = vmatpush1.bf16.xpose.msra.mxu0 0
        %2067 = vmatprep.subr.bf16.mxu0 0
        %2068 = vmatpush1.bf16.xpose.msra.mxu0 0
        %2069 = vmatprep.subr.bf16.mxu0 0
        %2070 = vmatpush1.bf16.xpose.msra.mxu0 0
        %2071 = vmatprep.subr.bf16.mxu0 0
        %2072 = vmatpush1.bf16.xpose.msra.mxu0 0
        %2073 = vmatprep.subr.bf16.mxu0 0
        %2074 = vmatpush1.bf16.xpose.msra.mxu0 0
        %2075 = vmatprep.subr.bf16.mxu0 0
        %2076 = vmatpush1.bf16.xpose.msra.mxu0 0
        %2077 = vmatprep.subr.bf16.mxu0 0
        %2078 = vmatpush1.bf16.xpose.msra.mxu0 0
        %2079 = vmatprep.subr.bf16.mxu0 0
        %2080 = vmatpush1.bf16.xpose.msra.mxu0 0
        %2081 = vmatprep.subr.bf16.mxu0 0
        %2082 = vmatpush1.bf16.xpose.msra.mxu0 0
        %2083 = vmatprep.subr.bf16.mxu0 0
        %2084 = vmatpush1.bf16.xpose.msra.mxu0 0
        %2085 = vmatprep.subr.bf16.mxu0 0
        %2086 = vmatpush1.bf16.xpose.msra.mxu0 0
        %2087 = vmatprep.subr.bf16.mxu0 0
        %2088 = vmatpush1.bf16.xpose.msra.mxu0 0
        %2089 = vmatprep.subr.bf16.mxu0 0
        %2090 = vmatpush1.bf16.xpose.msra.mxu0 0
        %2091 = vmatprep.subr.bf16.mxu0 0
        %2092 = vmatpush1.bf16.xpose.msra.mxu0 0
        %2093 = vmatprep.mubr.bf16.mxu0 0
        %2094 = vmatmul.mubr.bf16.gmra.mrb[0].mxu0 %v2056
        %v2095 = vpop.f32.mrb[0].mxu0
        %v2096 = vadd.f32 0.0, %v2095
        %v2097 = vpop.f32.mrb[0].mxu0
        %v2098 = vpop.f32.mrb[0].mxu0
        %v2099 = vpop.f32.mrb[0].mxu0
        %2100 = vdwg.mxu0
        %v2101 = vmul.f32 %v2050, 0.17677669
        %v2102 = vmul.f32 %v2096, 0.17677669
        %v2103 = vsel %vm492, %v2101, -inf
        %2104 = vmax.xlane.f32.xlu0 %v2103
        %v2105 = vpop.xlane.xlu0 %2104
        %v2106 = vsel %vm492, %v2102, -inf
        %2107 = vmax.xlane.f32.xlu0 %v2106
        %v2108 = vpop.xlane.xlu0 %2107
        %v2109 = vsub.f32 %v2101, %v2105
        %v2110 = vsub.f32 %v2102, %v2108
        %v2111 = vmul.f32 %v2109, 1.442695
        %v2112 = vpow.pop %v2111
        %v2113 = vmul.f32 %v2110, 1.442695
        %v2114 = vpow.pop %v2113
        %v2115 = vsel %vm492, %v2112, 0.0
        %2116 = vadd.xlane.f32.xlu0 %v2115
        %v2117 = vpop.xlane.xlu0 %2116
        %v2118 = vsel %vm492, %v2114, 0.0
        %2119 = vadd.xlane.f32.xlu0 %v2118
        %v2120 = vpop.xlane.xlu0 %2119
        %v2121 = vrcp.pop %v2117
        %v2122 = vrcp.pop %v2120
        %v2123 = vmul.f32 %v2112, %v2121
        %v2124 = vmul.f32 %v2114, %v2122
        %v2125 = vpack.c.bf16 %v2123, %v2123
        %v2126 = vpack.c.bf16 %v2124, %v2124
        %v2127 = vpack.c.bf16 %v1994, %v1991
        %v2128 = vpack.c.bf16 %v2002, %v1999
        %v2130 = vsel %vm492, %v2125, 0
        %2132 = vmatprep.subr.bf16.mxu0 0
        %2133 = vmatpush1.bf16.msra.mxu0 %v2127
        %2134 = vmatprep.subr.bf16.mxu0 0
        %2135 = vmatpush1.bf16.msra.mxu0 0
        %2136 = vmatprep.subr.bf16.mxu0 0
        %2137 = vmatpush1.bf16.msra.mxu0 0
        %2138 = vmatprep.subr.bf16.mxu0 0
        %2139 = vmatpush1.bf16.msra.mxu0 0
        %2140 = vmatprep.subr.bf16.mxu0 0
        %2141 = vmatpush1.bf16.msra.mxu0 0
        %2142 = vmatprep.subr.bf16.mxu0 0
        %2143 = vmatpush1.bf16.msra.mxu0 0
        %2144 = vmatprep.subr.bf16.mxu0 0
        %2145 = vmatpush1.bf16.msra.mxu0 0
        %2146 = vmatprep.subr.bf16.mxu0 0
        %2147 = vmatpush1.bf16.msra.mxu0 0
        %2148 = vmatprep.subr.bf16.mxu0 0
        %2149 = vmatpush1.bf16.msra.mxu0 0
        %2150 = vmatprep.subr.bf16.mxu0 0
        %2151 = vmatpush1.bf16.msra.mxu0 0
        %2152 = vmatprep.subr.bf16.mxu0 0
        %2153 = vmatpush1.bf16.msra.mxu0 0
        %2154 = vmatprep.subr.bf16.mxu0 0
        %2155 = vmatpush1.bf16.msra.mxu0 0
        %2156 = vmatprep.subr.bf16.mxu0 0
        %2157 = vmatpush1.bf16.msra.mxu0 0
        %2158 = vmatprep.subr.bf16.mxu0 0
        %2159 = vmatpush1.bf16.msra.mxu0 0
        %2160 = vmatprep.subr.bf16.mxu0 0
        %2161 = vmatpush1.bf16.msra.mxu0 0
        %2162 = vmatprep.subr.bf16.mxu0 0
        %2163 = vmatpush1.bf16.msra.mxu0 0
        %2164 = vmatprep.mubr.bf16.mxu0 0
        %2165 = vmatmul.mubr.bf16.gmra.mrb[0].mxu0 %v2130
        %v2166 = vpop.f32.mrb[0].mxu0
        %v2167 = vadd.f32 0.0, %v2166
        %v2168 = vpop.f32.mrb[0].mxu0
        %v2169 = vpop.f32.mrb[0].mxu0
        %v2170 = vpop.f32.mrb[0].mxu0
        %2171 = vdwg.mxu0
        %v2173 = vsel %vm492, %v2126, 0
        %2175 = vmatprep.subr.bf16.mxu0 0
        %2176 = vmatpush1.bf16.msra.mxu0 %v2128
        %2177 = vmatprep.subr.bf16.mxu0 0
        %2178 = vmatpush1.bf16.msra.mxu0 0
        %2179 = vmatprep.subr.bf16.mxu0 0
        %2180 = vmatpush1.bf16.msra.mxu0 0
        %2181 = vmatprep.subr.bf16.mxu0 0
        %2182 = vmatpush1.bf16.msra.mxu0 0
        %2183 = vmatprep.subr.bf16.mxu0 0
        %2184 = vmatpush1.bf16.msra.mxu0 0
        %2185 = vmatprep.subr.bf16.mxu0 0
        %2186 = vmatpush1.bf16.msra.mxu0 0
        %2187 = vmatprep.subr.bf16.mxu0 0
        %2188 = vmatpush1.bf16.msra.mxu0 0
        %2189 = vmatprep.subr.bf16.mxu0 0
        %2190 = vmatpush1.bf16.msra.mxu0 0
        %2191 = vmatprep.subr.bf16.mxu0 0
        %2192 = vmatpush1.bf16.msra.mxu0 0
        %2193 = vmatprep.subr.bf16.mxu0 0
        %2194 = vmatpush1.bf16.msra.mxu0 0
        %2195 = vmatprep.subr.bf16.mxu0 0
        %2196 = vmatpush1.bf16.msra.mxu0 0
        %2197 = vmatprep.subr.bf16.mxu0 0
        %2198 = vmatpush1.bf16.msra.mxu0 0
        %2199 = vmatprep.subr.bf16.mxu0 0
        %2200 = vmatpush1.bf16.msra.mxu0 0
        %2201 = vmatprep.subr.bf16.mxu0 0
        %2202 = vmatpush1.bf16.msra.mxu0 0
        %2203 = vmatprep.subr.bf16.mxu0 0
        %2204 = vmatpush1.bf16.msra.mxu0 0
        %2205 = vmatprep.subr.bf16.mxu0 0
        %2206 = vmatpush1.bf16.msra.mxu0 0
        %2207 = vmatprep.mubr.bf16.mxu0 0
        %2208 = vmatmul.mubr.bf16.gmra.mrb[0].mxu0 %v2173
        %v2209 = vpop.f32.mrb[0].mxu0
        %v2210 = vadd.f32 0.0, %v2209
        %v2211 = vpop.f32.mrb[0].mxu0
        %v2212 = vpop.f32.mrb[0].mxu0
        %v2213 = vpop.f32.mrb[0].mxu0
        %2214 = vdwg.mxu0
        %v2215 = vadd.f32 %v1867, %v2167
        %v2216 = vadd.f32 %v1870, %v2210
        %v2217 = vpack.c.bf16 %v2216, %v2215
        %s2218 = scalar_lea.vmem %s8, 12
        %v2219 = vld [vmem:[%s2218] sm:$0xf]
        %v2221 = vsel %vm616, %v2217, 0
        %v2224 = vsel %vm830, %v2219, 0
        %2226 = vmatprep.subr.bf16.mxu0 0
        %2227 = vmatpush1.bf16.msra.mxu0 %v2224
        %2228 = vmatprep.subr.bf16.mxu0 0
        %2229 = vmatpush1.bf16.msra.mxu0 0
        %2230 = vmatprep.subr.bf16.mxu0 0
        %2231 = vmatpush1.bf16.msra.mxu0 0
        %2232 = vmatprep.subr.bf16.mxu0 0
        %2233 = vmatpush1.bf16.msra.mxu0 0
        %2234 = vmatprep.subr.bf16.mxu0 0
        %2235 = vmatpush1.bf16.msra.mxu0 0
        %2236 = vmatprep.subr.bf16.mxu0 0
        %2237 = vmatpush1.bf16.msra.mxu0 0
        %2238 = vmatprep.subr.bf16.mxu0 0
        %2239 = vmatpush1.bf16.msra.mxu0 0
        %2240 = vmatprep.subr.bf16.mxu0 0
        %2241 = vmatpush1.bf16.msra.mxu0 0
        %2242 = vmatprep.subr.bf16.mxu0 0
        %2243 = vmatpush1.bf16.msra.mxu0 0
        %2244 = vmatprep.subr.bf16.mxu0 0
        %2245 = vmatpush1.bf16.msra.mxu0 0
        %2246 = vmatprep.subr.bf16.mxu0 0
        %2247 = vmatpush1.bf16.msra.mxu0 0
        %2248 = vmatprep.subr.bf16.mxu0 0
        %2249 = vmatpush1.bf16.msra.mxu0 0
        %2250 = vmatprep.subr.bf16.mxu0 0
        %2251 = vmatpush1.bf16.msra.mxu0 0
        %2252 = vmatprep.subr.bf16.mxu0 0
        %2253 = vmatpush1.bf16.msra.mxu0 0
        %2254 = vmatprep.subr.bf16.mxu0 0
        %2255 = vmatpush1.bf16.msra.mxu0 0
        %2256 = vmatprep.subr.bf16.mxu0 0
        %2257 = vmatpush1.bf16.msra.mxu0 0
        %2258 = vmatprep.mubr.bf16.mxu0 0
        %2259 = vmatmul.mubr.bf16.gmra.mrb[0].mxu0 %v2221
        %v2260 = vpop.f32.mrb[0].mxu0
        %v2261 = vadd.f32 0.0, %v2260
        %v2262 = vpop.f32.mrb[0].mxu0
        %v2263 = vpop.f32.mrb[0].mxu0
        %v2264 = vadd.f32 0.0, %v2263
        %v2265 = vpop.f32.mrb[0].mxu0
        %2266 = vdwg.mxu0
        %v2267 = vadd.f32 %v1805, %v2261
        %v2268 = vadd.f32 %v1806, %v2264
        %2271 = vrot.lane.b32.xlu0 %v1291, 8
        %v2272 = vpop.permute.xlu0 %2271
        %2273 = vrot.lane.b32.xlu0 %v1292, 8
        %v2274 = vpop.permute.xlu0 %2273
        %2279 = vrot.lane.b32.xlu0 %v1753, 16
        %v2280 = vpop.permute.xlu0 %2279
        %2281 = vrot.lane.b32.xlu0 %v1754, 16
        %v2282 = vpop.permute.xlu0 %2281
        %2287 = vrot.lane.b32.xlu0 %v2215, 24
        %v2288 = vpop.permute.xlu0 %2287
        %2289 = vrot.lane.b32.xlu0 %v2216, 24
        %v2290 = vpop.permute.xlu0 %2289
        %v2293 = vsel %vm616, %v823, %v2272
        %v2294 = vsel %vm616, %v824, %v2274
        %v2295 = vsel %vm492, %v2293, %v2280
        %v2296 = vsel %vm492, %v2294, %v2282
        %vm2297 = vcmask 195584
        %v2298 = vsel %vm2297, %v2295, %v2288
        %v2299 = vsel %vm2297, %v2296, %v2290
        %v2300 = vxor.u32 %v2267, 2147483648
        %v2301 = vxor.u32 %v2268, 2147483648
        %v2302 = vmul.f32 %v2300, 1.442695
        %v2303 = vpow.pop %v2302
        %v2304 = vmul.f32 %v2301, 1.442695
        %v2305 = vpow.pop %v2304
        %v2306 = vadd.f32 %v2303, 1.0
        %v2307 = vadd.f32 %v2305, 1.0
        %v2308 = vrcp.pop %v2306
        %v2309 = vmul.f32 1.0, %v2308
        %v2310 = vrcp.pop %v2307
        %v2311 = vmul.f32 1.0, %v2310
        %v2312 = vadd.f32 %v2298, %v2309
        %v2313 = vadd.f32 %v2299, %v2311
        %2314 = vst.msk [vmem:[%s371] sm:$0xff] %vm422, %v2312
        %2315 = vst.msk [vmem:[%s371 + $0x8] sm:$0xff] %vm422, %v2313
        %s2316 = sand.u32 %s252, 1
        %s2317 = scalar_lea.sflag [#allocation3], %s2316
        %s2318 = sand.u32 %s252, 1
        %s2319 = smul.addr %s2318, 16
        %s2320 = scalar_lea.vmem [#allocation2], %s2319
        // Predicated region
        $region61: #{tpu_custom_call.1} parent=59 // pred_check
          %p2321 = pneg %p262
        $region62: #{tpu_custom_call.1} parent=59 // pred_check_branch
          %2323 = sbr.rel (%p2321) target = $region64
        $region63: #{tpu_custom_call.1} parent=59 // pred_region
          %s2324 = smul.u32 2, %s24
          %s2326 = ssub.s32 256, 256
          %2327 = vsyncadd %s2317, %s2326
          %s2328 = smul.addr %s2324, 128
          %s2329 = scalar_lea.hbm %s10, %s2328
          %s2330 = sshll.u32 %s2320, 4
          %s2331 = int_to_ptr.vmem [resolvable:$true] %s2330
          %2336 = dma.vmem_to_hbm [thread:$0]  %s2331, 256, %s2329, %s2317, 128, 128, 8
        $region64: #{tpu_custom_call.1} parent=59 // pred_fallthru
          _
      $region60: #{tpu_custom_call.1} parent=5 // pred_fallthru
        _
      %p2337 = scmp.le.s32.totalorder 2, %s19
      // Predicated region
      $region65: #{tpu_custom_call.1} parent=5 // pred_check
        %p2338 = pneg %p2337
      $region66: #{tpu_custom_call.1} parent=5 // pred_check_branch
        %2340 = sbr.rel (%p2338) target = $region68
      $region67: #{tpu_custom_call.1} parent=5 // pred_region
        %s2341 = ssub.s32 %s19, 2
        // Predicated region
        $region69: #{tpu_custom_call.1} parent=67 // pred_check
          %p2342 = pneg %p268
        $region70: #{tpu_custom_call.1} parent=67 // pred_check_branch
          %2344 = sbr.rel (%p2342) target = $region72
        $region71: #{tpu_custom_call.1} parent=67 // pred_region
          %s2345 = sand.u32 %s253, 1
          %s2346 = scalar_lea.sflag [#allocation3], %s2345
          %s2347 = sand.u32 %s253, 1
          %s2348 = smul.addr %s2347, 16
          %s2349 = scalar_lea.vmem [#allocation2], %s2348
          %2350 = dma.done %s2346, 256
        $region72: #{tpu_custom_call.1} parent=67 // pred_fallthru
          _
      $region68: #{tpu_custom_call.1} parent=5 // pred_fallthru
        _
    $region6: #{tpu_custom_call.1} parent=1 // loop_footer
      %s23 = sadd.s32 1, %s19
    $region7: #{tpu_custom_call.1} parent=1 // loop_footer_branch
      %18 = sbr.rel target = $region3
    $region8: #{tpu_custom_call.1} parent=1 // loop_exit
      _
    %2351 = vsyncpa [#allocation3], 1
    %s2352 = scalar_lea.sflag [#allocation3], 1
    %2353 = vsyncpa %s2352, 1

</llo_original>
